<compile_context>
chip_gen: v7x
topology: tpu7x:2x2x1
jax: 0.10.0
libtpu: 0.0.40
codegen_flags: <defaults>
</compile_context>

<pallas_src>
import functools

import jax
import jax.numpy as jnp
from jax.experimental import pallas as pl
from jax.experimental.pallas import tpu as pltpu


def digitcaps_kernel(u_ref, w_ref, e_ref, s_ref, out_ref,
                     uhat_ref, bij_ref, agree_ref, *, B, D_in):
    it = pl.program_id(0)          # routing iteration (major)
    bt = pl.program_id(1)          # batch tile (minor)
    last_it = pl.num_programs(0) - 1
    last_bt = pl.num_programs(1) - 1

    # ---- carried-state init -------------------------------------------------
    @pl.when(jnp.logical_and(it == 0, bt == 0))
    def _init_logits():
        bij_ref[...] = jnp.zeros_like(bij_ref)

    @pl.when(bt == 0)              # start of every routing iteration
    def _reset_agreement():
        agree_ref[...] = jnp.zeros_like(agree_ref)

    # ---- prediction vectors u_hat for this batch tile: (TB, N_in, F) --------
    # u_hat[b,i,j*D_out+d] = sum_k u[b,i,k] * W[i,j,d,k]
    acc = u_ref[:, 0] * w_ref[0][None]            # (TB,N_in,1)*(1,N_in,F)
    for k in range(1, D_in):
        acc = acc + u_ref[:, k] * w_ref[k][None]
    uhat_ref[...] = acc                           # park in VMEM scratch

    # ---- one routing step ----------------------------------------------------
    b_ij = bij_ref[...]                                            # (N_in, N_out)
    m = jnp.max(b_ij, axis=1, keepdims=True)
    exps = jnp.exp(b_ij - m)
    c = exps / jnp.sum(exps, axis=1, keepdims=True)                # softmax over N_out
    c_exp = jnp.dot(c, e_ref[...],
                    preferred_element_type=jnp.float32)            # (N_in, F)

    # s[b, j*D_out+d] = sum_i c[i,j] * u_hat[b,i,j,d]  -- one batched slab op
    s_all = jnp.sum(c_exp[None] * uhat_ref[...], axis=1)           # (TB, F)

    # squash:  v = s / (1 + ||s||^2)  per output capsule
    norm_sq = jnp.dot(s_all * s_all, s_ref[...],
                      preferred_element_type=jnp.float32)          # (TB, N_out)
    denom = 1.0 + norm_sq
    inv = pl.reciprocal(denom, approx=True)        # EUP seed (off the VALU path)
    inv = inv * (2.0 - denom * inv)                # one Newton step -> f32 accuracy
    v_all = s_all * jnp.dot(inv, e_ref[...],
                            preferred_element_type=jnp.float32)    # (TB, F)

    # write every visit; the final iteration's write is the one that lands.
    out_ref[...] = v_all

    not_last = it < last_it

    @pl.when(not_last)
    def _accumulate_agreement():
        # batch-sum on the VPU first, then a single (N_in,F)@(F,N_out) matmul
        w_sum = jnp.sum(uhat_ref[...] * v_all[:, None, :], axis=0)  # (N_in, F)
        agree_ref[...] = agree_ref[...] + jnp.dot(
            w_sum, s_ref[...], preferred_element_type=jnp.float32)  # (N_in, N_out)

    @pl.when(jnp.logical_and(not_last, bt == last_bt))
    def _update_logits():
        bij_ref[...] = bij_ref[...] + agree_ref[...] * (1.0 / B)


def prepare_digitcaps_params(W):
    """One-time (parameter-init-time) re-layout of W plus the selector matrices."""
    W = W.astype(jnp.float32)
    N_in, N_out, D_out, D_in = W.shape
    F = N_out * D_out
    # w_t[k, i, j*D_out + d] = W[i, j, d, k]
    w_t = jnp.transpose(W, (3, 0, 1, 2)).reshape(D_in, N_in, F)
    # E[j', j*D_out+d] = 1 iff j'==j  (expands a per-capsule scalar over D_out lanes)
    col = jnp.arange(F) // D_out
    E = (jnp.arange(N_out)[:, None] == col[None, :]).astype(jnp.float32)  # (N_out, F)
    S = jnp.transpose(E)                                                   # (F, N_out)
    return w_t, E, S


def digitcaps_forward(u, w_t, E, S, *, iterations=3, batch_tile=None):
    """u: (B, in_capsule_n, in_capsule_size); (w_t, E, S) from prepare_digitcaps_params."""
    u = u.astype(jnp.float32)
    B, N_in, D_in = u.shape
    N_out, F = E.shape
    D_out = F // N_out

    # Batch tile: TB must be a multiple of 8 or equal to B (lane/sublane rules on
    # the (TB, F) output block), and divide B.  uhat scratch is TB*N_in*F*4 bytes,
    # so TB also bounds VMEM use on 64-MiB-VMEM parts (v7x).
    TB = batch_tile if batch_tile is not None else (B if B <= 8 else 8)
    if B % TB != 0 or (TB % 8 != 0 and TB != B):
        # TODO(synk): pad the batch instead of falling back to a single tile.
        TB = B
    num_bt = B // TB

    u_t = jnp.transpose(u, (0, 2, 1))[..., None]        # (B, D_in, N_in, 1) -- tiny

    kernel = functools.partial(digitcaps_kernel, B=B, D_in=D_in)

    out_flat = pl.pallas_call(
        kernel,
        out_shape=jax.ShapeDtypeStruct((B, F), jnp.float32),
        grid=(iterations, num_bt),
        in_specs=[
            pl.BlockSpec((TB, D_in, N_in, 1), lambda it, bt: (bt, 0, 0, 0)),
            pl.BlockSpec((D_in, N_in, F), lambda it, bt: (0, 0, 0)),   # W: resident
            pl.BlockSpec((N_out, F), lambda it, bt: (0, 0)),           # E: resident
            pl.BlockSpec((F, N_out), lambda it, bt: (0, 0)),           # S: resident
        ],
        out_specs=pl.BlockSpec((TB, F), lambda it, bt: (bt, 0)),
        scratch_shapes=[
            pltpu.VMEM((TB, N_in, F), jnp.float32),   # u_hat slab (per batch tile)
            pltpu.VMEM((N_in, N_out), jnp.float32),   # b_ij (shared across batch)
            pltpu.VMEM((N_in, N_out), jnp.float32),   # per-iteration agreement acc
        ],
        compiler_params=pltpu.CompilerParams(
            # Both axes carry accumulators (b_ij across iterations, the agreement
            # across batch tiles), so neither may be "parallel".
            dimension_semantics=("arbitrary", "arbitrary"),
            vmem_limit_bytes=32 * 1024 * 1024,
        ),
    )(u_t, w_t, E, S)
    return out_flat.reshape(B, N_out, D_out)


def digitcaps_reference(u, W, iterations=3):
    """Pure-JAX mirror of the PyTorch forward (for verification)."""
    u = u.astype(jnp.float32)
    W = W.astype(jnp.float32)
    B, N_in, _ = u.shape
    _, N_out, D_out, _ = W.shape
    u_hat = jnp.einsum('ijdk,bik->bijd', W, u)            # (B, N_in, N_out, D_out)
    b_ij = jnp.zeros((N_in, N_out), jnp.float32)
    v = None
    for it in range(iterations):
        c = jax.nn.softmax(b_ij, axis=1)                  # (N_in, N_out)
        s = jnp.einsum('ij,bijd->bjd', c, u_hat)          # (B, N_out, D_out)
        norm_sq = jnp.sum(s * s, axis=2, keepdims=True)
        norm = jnp.sqrt(norm_sq)
        v = norm / (1.0 + norm_sq) * (s / norm)           # == squash(s, dim=3)
        if it != iterations - 1:
            agree = jnp.einsum('bijd,bjd->ij', u_hat, v) / B
            b_ij = b_ij + agree
    return v


if __name__ == "__main__":
    # Small shapes consistent with the module (in_capsule_size=4, out_capsule_size=32,
    # scaled-down capsule counts).
    B = 2
    N_in, D_in = 64, 4      # in_capsule_n, in_capsule_size
    N_out, D_out = 8, 32    # out_capsule_n, out_capsule_size

    key = jax.random.PRNGKey(0)
    k_u, k_w = jax.random.split(key)
    u = jax.random.normal(k_u, (B, N_in, D_in), dtype=jnp.float32)
    W = jax.random.normal(k_w, (N_in, N_out, D_out, D_in), dtype=jnp.float32)

    w_t, E, S = prepare_digitcaps_params(W)        # one-time weight re-layout
    out = jax.block_until_ready(digitcaps_forward(u, w_t, E, S, iterations=3))
    ref = jax.block_until_ready(digitcaps_reference(u, W, iterations=3))

    assert out.shape == (B, N_out, D_out), out.shape
    if not bool(jnp.allclose(out, ref, atol=1e-3, rtol=1e-3)):
        raise AssertionError("Pallas kernel does not match JAX reference")
    print("KERNEL_OK")
</pallas_src>

<mosaic_0001>
module attributes {stable_mosaic.version = 11 : i64} {
  func.func @digitcaps_kernel(%arg0: i32, %arg1: i32, %arg2: memref<2x4x64x1xf32, #tpu.memory_space<vmem>>, %arg3: memref<4x64x256xf32, #tpu.memory_space<vmem>>, %arg4: memref<8x256xf32, #tpu.memory_space<vmem>>, %arg5: memref<256x8xf32, #tpu.memory_space<vmem>>, %arg6: memref<2x256xf32, #tpu.memory_space<vmem>>, %arg7: memref<2x64x256xf32, #tpu.memory_space<vmem>>, %arg8: memref<64x8xf32, #tpu.memory_space<vmem>>, %arg9: memref<64x8xf32, #tpu.memory_space<vmem>>) attributes {dimension_semantics = [#tpu.dimension_semantics<arbitrary>, #tpu.dimension_semantics<arbitrary>], iteration_bounds = array<i64: 3, 1>, scalar_prefetch = 0 : i64, scratch_operands = 3 : i64, tpu.core_type = #tpu.core_type<tc>, window_params = [{transform_indices = @transform_0, window_bounds = array<i64: 2, 4, 64, 1>}, {pipeline_mode = #tpu.pipeline_mode<synchronous>, transform_indices = @transform_1, window_bounds = array<i64: 4, 64, 256>}, {pipeline_mode = #tpu.pipeline_mode<synchronous>, transform_indices = @transform_2, window_bounds = array<i64: 8, 256>}, {pipeline_mode = #tpu.pipeline_mode<synchronous>, transform_indices = @transform_3, window_bounds = array<i64: 256, 8>}, {transform_indices = @transform_4, window_bounds = array<i64: 2, 256>}]} {
    %c0_i32 = arith.constant 0 : i32
    %0 = arith.cmpi eq, %arg0, %c0_i32 : i32
    %c0_i32_0 = arith.constant 0 : i32
    %1 = arith.cmpi eq, %arg1, %c0_i32_0 : i32
    %2 = arith.andi %0, %1 : i1
    %3 = arith.extui %2 : i1 to i32
    %c0_i32_1 = arith.constant 0 : i32
    %4 = arith.cmpi ne, %3, %c0_i32_1 : i32
    scf.if %4 {
      %cst_54 = arith.constant 0.000000e+00 : f32
      %82 = vector.broadcast %cst_54 : f32 to vector<64x8xf32>
      %c0_55 = arith.constant 0 : index
      %c0_56 = arith.constant 0 : index
      %83 = vector.load %arg8[%c0_55, %c0_56] : memref<64x8xf32, #tpu.memory_space<vmem>>, vector<64x8xf32>
      tpu.vector_store %arg8[%c0_55, %c0_56], %82 {strides = array<i32>} : memref<64x8xf32, #tpu.memory_space<vmem>>, vector<64x8xf32>,
    } else {
    }
    %c0_i32_2 = arith.constant 0 : i32
    %5 = arith.cmpi eq, %arg1, %c0_i32_2 : i32
    %6 = arith.extui %5 : i1 to i32
    %c0_i32_3 = arith.constant 0 : i32
    %7 = arith.cmpi ne, %6, %c0_i32_3 : i32
    scf.if %7 {
      %cst_54 = arith.constant 0.000000e+00 : f32
      %82 = vector.broadcast %cst_54 : f32 to vector<64x8xf32>
      %c0_55 = arith.constant 0 : index
      %c0_56 = arith.constant 0 : index
      %83 = vector.load %arg9[%c0_55, %c0_56] : memref<64x8xf32, #tpu.memory_space<vmem>>, vector<64x8xf32>
      tpu.vector_store %arg9[%c0_55, %c0_56], %82 {strides = array<i32>} : memref<64x8xf32, #tpu.memory_space<vmem>>, vector<64x8xf32>,
    } else {
    }
    %c0 = arith.constant 0 : index
    %c0_4 = arith.constant 0 : index
    %c0_5 = arith.constant 0 : index
    %c0_6 = arith.constant 0 : index
    %8 = vector.load %arg2[%c0, %c0_4, %c0_5, %c0_6] : memref<2x4x64x1xf32, #tpu.memory_space<vmem>>, vector<2x1x64x1xf32>
    %9 = vector.shape_cast %8 : vector<2x1x64x1xf32> to vector<2x64x1xf32>
    %c0_7 = arith.constant 0 : index
    %c0_8 = arith.constant 0 : index
    %c0_9 = arith.constant 0 : index
    %10 = vector.load %arg3[%c0_7, %c0_8, %c0_9] : memref<4x64x256xf32, #tpu.memory_space<vmem>>, vector<1x64x256xf32>
    %11 = vector.shape_cast %10 : vector<1x64x256xf32> to vector<64x256xf32>
    %12 = vector.shape_cast %11 : vector<64x256xf32> to vector<1x64x256xf32>
    %13 = vector.broadcast %9 : vector<2x64x1xf32> to vector<2x64x256xf32>
    %14 = vector.broadcast %12 : vector<1x64x256xf32> to vector<2x64x256xf32>
    %15 = arith.mulf %13, %14 : vector<2x64x256xf32>
    %c0_10 = arith.constant 0 : index
    %c1 = arith.constant 1 : index
    %c0_11 = arith.constant 0 : index
    %c0_12 = arith.constant 0 : index
    %16 = vector.load %arg2[%c0_10, %c1, %c0_11, %c0_12] : memref<2x4x64x1xf32, #tpu.memory_space<vmem>>, vector<2x1x64x1xf32>
    %17 = vector.shape_cast %16 : vector<2x1x64x1xf32> to vector<2x64x1xf32>
    %c1_13 = arith.constant 1 : index
    %c0_14 = arith.constant 0 : index
    %c0_15 = arith.constant 0 : index
    %18 = vector.load %arg3[%c1_13, %c0_14, %c0_15] : memref<4x64x256xf32, #tpu.memory_space<vmem>>, vector<1x64x256xf32>
    %19 = vector.shape_cast %18 : vector<1x64x256xf32> to vector<64x256xf32>
    %20 = vector.shape_cast %19 : vector<64x256xf32> to vector<1x64x256xf32>
    %21 = vector.broadcast %17 : vector<2x64x1xf32> to vector<2x64x256xf32>
    %22 = vector.broadcast %20 : vector<1x64x256xf32> to vector<2x64x256xf32>
    %23 = arith.mulf %21, %22 : vector<2x64x256xf32>
    %24 = arith.addf %15, %23 : vector<2x64x256xf32>
    %c0_16 = arith.constant 0 : index
    %c2 = arith.constant 2 : index
    %c0_17 = arith.constant 0 : index
    %c0_18 = arith.constant 0 : index
    %25 = vector.load %arg2[%c0_16, %c2, %c0_17, %c0_18] : memref<2x4x64x1xf32, #tpu.memory_space<vmem>>, vector<2x1x64x1xf32>
    %26 = vector.shape_cast %25 : vector<2x1x64x1xf32> to vector<2x64x1xf32>
    %c2_19 = arith.constant 2 : index
    %c0_20 = arith.constant 0 : index
    %c0_21 = arith.constant 0 : index
    %27 = vector.load %arg3[%c2_19, %c0_20, %c0_21] : memref<4x64x256xf32, #tpu.memory_space<vmem>>, vector<1x64x256xf32>
    %28 = vector.shape_cast %27 : vector<1x64x256xf32> to vector<64x256xf32>
    %29 = vector.shape_cast %28 : vector<64x256xf32> to vector<1x64x256xf32>
    %30 = vector.broadcast %26 : vector<2x64x1xf32> to vector<2x64x256xf32>
    %31 = vector.broadcast %29 : vector<1x64x256xf32> to vector<2x64x256xf32>
    %32 = arith.mulf %30, %31 : vector<2x64x256xf32>
    %33 = arith.addf %24, %32 : vector<2x64x256xf32>
    %c0_22 = arith.constant 0 : index
    %c3 = arith.constant 3 : index
    %c0_23 = arith.constant 0 : index
    %c0_24 = arith.constant 0 : index
    %34 = vector.load %arg2[%c0_22, %c3, %c0_23, %c0_24] : memref<2x4x64x1xf32, #tpu.memory_space<vmem>>, vector<2x1x64x1xf32>
    %35 = vector.shape_cast %34 : vector<2x1x64x1xf32> to vector<2x64x1xf32>
    %c3_25 = arith.constant 3 : index
    %c0_26 = arith.constant 0 : index
    %c0_27 = arith.constant 0 : index
    %36 = vector.load %arg3[%c3_25, %c0_26, %c0_27] : memref<4x64x256xf32, #tpu.memory_space<vmem>>, vector<1x64x256xf32>
    %37 = vector.shape_cast %36 : vector<1x64x256xf32> to vector<64x256xf32>
    %38 = vector.shape_cast %37 : vector<64x256xf32> to vector<1x64x256xf32>
    %39 = vector.broadcast %35 : vector<2x64x1xf32> to vector<2x64x256xf32>
    %40 = vector.broadcast %38 : vector<1x64x256xf32> to vector<2x64x256xf32>
    %41 = arith.mulf %39, %40 : vector<2x64x256xf32>
    %42 = arith.addf %33, %41 : vector<2x64x256xf32>
    %c0_28 = arith.constant 0 : index
    %c0_29 = arith.constant 0 : index
    %c0_30 = arith.constant 0 : index
    %43 = vector.load %arg7[%c0_28, %c0_29, %c0_30] : memref<2x64x256xf32, #tpu.memory_space<vmem>>, vector<2x64x256xf32>
    tpu.vector_store %arg7[%c0_28, %c0_29, %c0_30], %42 {strides = array<i32>} : memref<2x64x256xf32, #tpu.memory_space<vmem>>, vector<2x64x256xf32>,
    %c0_31 = arith.constant 0 : index
    %c0_32 = arith.constant 0 : index
    %44 = vector.load %arg8[%c0_31, %c0_32] : memref<64x8xf32, #tpu.memory_space<vmem>>, vector<64x8xf32>
    %cst = arith.constant dense<0xFF800000> : vector<64xf32>
    %45 = vector.multi_reduction <maximumf>, %44, %cst [1] : vector<64x8xf32> to vector<64xf32>
    %46 = vector.shape_cast %45 : vector<64xf32> to vector<64x1xf32>
    %47 = vector.broadcast %46 : vector<64x1xf32> to vector<64x8xf32>
    %48 = arith.subf %44, %47 : vector<64x8xf32>
    %49 = math.exp %48 : vector<64x8xf32>
    %cst_33 = arith.constant dense<0.000000e+00> : vector<64xf32>
    %50 = vector.multi_reduction <add>, %49, %cst_33 [1] : vector<64x8xf32> to vector<64xf32>
    %51 = vector.shape_cast %50 : vector<64xf32> to vector<64x1xf32>
    %52 = vector.broadcast %51 : vector<64x1xf32> to vector<64x8xf32>
    %53 = arith.divf %49, %52 : vector<64x8xf32>
    %c0_34 = arith.constant 0 : index
    %c0_35 = arith.constant 0 : index
    %54 = vector.load %arg4[%c0_34, %c0_35] : memref<8x256xf32, #tpu.memory_space<vmem>>, vector<8x256xf32>
    %cst_36 = arith.constant dense<0.000000e+00> : vector<64x256xf32>
    %55 = tpu.matmul %53, %54, %cst_36 {dimension_numbers = #tpu.dot_dimension_numbers<[1], [0], [0], [1], [0, 0, 1, 1], [], []>} : vector<64x8xf32>, vector<8x256xf32>, vector<64x256xf32> -> vector<64x256xf32>
    %56 = vector.shape_cast %55 : vector<64x256xf32> to vector<1x64x256xf32>
    %c0_37 = arith.constant 0 : index
    %c0_38 = arith.constant 0 : index
    %c0_39 = arith.constant 0 : index
    %57 = vector.load %arg7[%c0_37, %c0_38, %c0_39] : memref<2x64x256xf32, #tpu.memory_space<vmem>>, vector<2x64x256xf32>
    %58 = vector.broadcast %56 : vector<1x64x256xf32> to vector<2x64x256xf32>
    %59 = arith.mulf %58, %57 : vector<2x64x256xf32>
    %cst_40 = arith.constant dense<0.000000e+00> : vector<2x256xf32>
    %60 = vector.multi_reduction <add>, %59, %cst_40 [1] : vector<2x64x256xf32> to vector<2x256xf32>
    %61 = arith.mulf %60, %60 : vector<2x256xf32>
    %c0_41 = arith.constant 0 : index
    %c0_42 = arith.constant 0 : index
    %62 = vector.load %arg5[%c0_41, %c0_42] : memref<256x8xf32, #tpu.memory_space<vmem>>, vector<256x8xf32>
    %cst_43 = arith.constant dense<0.000000e+00> : vector<2x8xf32>
    %63 = tpu.matmul %61, %62, %cst_43 {dimension_numbers = #tpu.dot_dimension_numbers<[1], [0], [0], [1], [0, 0, 1, 1], [], []>} : vector<2x256xf32>, vector<256x8xf32>, vector<2x8xf32> -> vector<2x8xf32>
    %cst_44 = arith.constant 1.000000e+00 : f32
    %64 = vector.broadcast %cst_44 : f32 to vector<2x8xf32>
    %65 = arith.addf %64, %63 : vector<2x8xf32>
    %66 = tpu.reciprocal %65 {approx = true} : vector<2x8xf32> -> vector<2x8xf32>
    %67 = arith.mulf %65, %66 : vector<2x8xf32>
    %cst_45 = arith.constant 2.000000e+00 : f32
    %68 = vector.broadcast %cst_45 : f32 to vector<2x8xf32>
    %69 = arith.subf %68, %67 : vector<2x8xf32>
    %70 = arith.mulf %66, %69 : vector<2x8xf32>
    %c0_46 = arith.constant 0 : index
    %c0_47 = arith.constant 0 : index
    %71 = vector.load %arg4[%c0_46, %c0_47] : memref<8x256xf32, #tpu.memory_space<vmem>>, vector<8x256xf32>
    %cst_48 = arith.constant dense<0.000000e+00> : vector<2x256xf32>
    %72 = tpu.matmul %70, %71, %cst_48 {dimension_numbers = #tpu.dot_dimension_numbers<[1], [0], [0], [1], [0, 0, 1, 1], [], []>} : vector<2x8xf32>, vector<8x256xf32>, vector<2x256xf32> -> vector<2x256xf32>
    %73 = arith.mulf %60, %72 : vector<2x256xf32>
    %c0_49 = arith.constant 0 : index
    %c0_50 = arith.constant 0 : index
    %74 = vector.load %arg6[%c0_49, %c0_50] : memref<2x256xf32, #tpu.memory_space<vmem>>, vector<2x256xf32>
    tpu.vector_store %arg6[%c0_49, %c0_50], %73 {strides = array<i32>} : memref<2x256xf32, #tpu.memory_space<vmem>>, vector<2x256xf32>,
    %c2_i32 = arith.constant 2 : i32
    %75 = arith.cmpi slt, %arg0, %c2_i32 : i32
    %76 = arith.extui %75 : i1 to i32
    %c0_i32_51 = arith.constant 0 : i32
    %77 = arith.cmpi ne, %76, %c0_i32_51 : i32
    scf.if %77 {
      %c0_54 = arith.constant 0 : index
      %c0_55 = arith.constant 0 : index
      %c0_56 = arith.constant 0 : index
      %82 = vector.load %arg7[%c0_54, %c0_55, %c0_56] : memref<2x64x256xf32, #tpu.memory_space<vmem>>, vector<2x64x256xf32>
      %83 = vector.shape_cast %73 : vector<2x256xf32> to vector<2x1x256xf32>
      %84 = vector.broadcast %83 : vector<2x1x256xf32> to vector<2x64x256xf32>
      %85 = arith.mulf %82, %84 : vector<2x64x256xf32>
      %cst_57 = arith.constant dense<0.000000e+00> : vector<64x256xf32>
      %86 = vector.multi_reduction <add>, %85, %cst_57 [0] : vector<2x64x256xf32> to vector<64x256xf32>
      %c0_58 = arith.constant 0 : index
      %c0_59 = arith.constant 0 : index
      %87 = vector.load %arg9[%c0_58, %c0_59] : memref<64x8xf32, #tpu.memory_space<vmem>>, vector<64x8xf32>
      %c0_60 = arith.constant 0 : index
      %c0_61 = arith.constant 0 : index
      %88 = vector.load %arg5[%c0_60, %c0_61] : memref<256x8xf32, #tpu.memory_space<vmem>>, vector<256x8xf32>
      %cst_62 = arith.constant dense<0.000000e+00> : vector<64x8xf32>
      %89 = tpu.matmul %86, %88, %cst_62 {dimension_numbers = #tpu.dot_dimension_numbers<[1], [0], [0], [1], [0, 0, 1, 1], [], []>} : vector<64x256xf32>, vector<256x8xf32>, vector<64x8xf32> -> vector<64x8xf32>
      %90 = arith.addf %87, %89 : vector<64x8xf32>
      %c0_63 = arith.constant 0 : index
      %c0_64 = arith.constant 0 : index
      %91 = vector.load %arg9[%c0_63, %c0_64] : memref<64x8xf32, #tpu.memory_space<vmem>>, vector<64x8xf32>
      tpu.vector_store %arg9[%c0_63, %c0_64], %90 {strides = array<i32>} : memref<64x8xf32, #tpu.memory_space<vmem>>, vector<64x8xf32>,
    } else {
    }
    %c0_i32_52 = arith.constant 0 : i32
    %78 = arith.cmpi eq, %arg1, %c0_i32_52 : i32
    %79 = arith.andi %75, %78 : i1
    %80 = arith.extui %79 : i1 to i32
    %c0_i32_53 = arith.constant 0 : i32
    %81 = arith.cmpi ne, %80, %c0_i32_53 : i32
    scf.if %81 {
      %c0_54 = arith.constant 0 : index
      %c0_55 = arith.constant 0 : index
      %82 = vector.load %arg8[%c0_54, %c0_55] : memref<64x8xf32, #tpu.memory_space<vmem>>, vector<64x8xf32>
      %c0_56 = arith.constant 0 : index
      %c0_57 = arith.constant 0 : index
      %83 = vector.load %arg9[%c0_56, %c0_57] : memref<64x8xf32, #tpu.memory_space<vmem>>, vector<64x8xf32>
      %cst_58 = arith.constant 5.000000e-01 : f32
      %84 = vector.broadcast %cst_58 : f32 to vector<64x8xf32>
      %85 = arith.mulf %83, %84 : vector<64x8xf32>
      %86 = arith.addf %82, %85 : vector<64x8xf32>
      %c0_59 = arith.constant 0 : index
      %c0_60 = arith.constant 0 : index
      %87 = vector.load %arg8[%c0_59, %c0_60] : memref<64x8xf32, #tpu.memory_space<vmem>>, vector<64x8xf32>
      tpu.vector_store %arg8[%c0_59, %c0_60], %86 {strides = array<i32>} : memref<64x8xf32, #tpu.memory_space<vmem>>, vector<64x8xf32>,
    } else {
    }
    return
  }
  func.func @transform_0(%arg0: i32, %arg1: i32) -> (i32, i32, i32, i32) {
    %c0_i32 = arith.constant 0 : i32
    %c0_i32_0 = arith.constant 0 : i32
    %c0_i32_1 = arith.constant 0 : i32
    %c0_i32_2 = arith.constant 0 : i32
    return %arg1, %c0_i32, %c0_i32_0, %c0_i32_1 : i32, i32, i32, i32
  }
  func.func @transform_1(%arg0: i32, %arg1: i32) -> (i32, i32, i32) {
    %c0_i32 = arith.constant 0 : i32
    %c0_i32_0 = arith.constant 0 : i32
    %c0_i32_1 = arith.constant 0 : i32
    %c0_i32_2 = arith.constant 0 : i32
    return %c0_i32, %c0_i32_0, %c0_i32_1 : i32, i32, i32
  }
  func.func @transform_2(%arg0: i32, %arg1: i32) -> (i32, i32) {
    %c0_i32 = arith.constant 0 : i32
    %c0_i32_0 = arith.constant 0 : i32
    %c0_i32_1 = arith.constant 0 : i32
    return %c0_i32, %c0_i32_0 : i32, i32
  }
  func.func @transform_3(%arg0: i32, %arg1: i32) -> (i32, i32) {
    %c0_i32 = arith.constant 0 : i32
    %c0_i32_0 = arith.constant 0 : i32
    %c0_i32_1 = arith.constant 0 : i32
    return %c0_i32, %c0_i32_0 : i32, i32
  }
  func.func @transform_4(%arg0: i32, %arg1: i32) -> (i32, i32) {
    %c0_i32 = arith.constant 0 : i32
    %c0_i32_0 = arith.constant 0 : i32
    return %arg1, %c0_i32 : i32, i32
  }
}

</mosaic_0001>

<llo_original>
// kernel: tpu_custom_call.1
$region0: #{tpu_custom_call.1}
  #allocation0 [shape = 'u32[]', space=smem, size = 0x4, offset = 0x4, fixed_abs, tag = 'smem constant byte address 0x4 - core index']
  #allocation1 [shape = 'u32[144,128]{1,0:T(1,128)}', space=vmem, size = 0x12000, scoped, tag = 'internal scratch']
  #allocation2 [shape = 'f32[2,64,256]{2,1,0:T(8,128)}', space=vmem, size = 0x20000, scoped, tag = 'scratch operand']
  #allocation3 [shape = 'f32[64,8]{1,0:T(8,128)}', space=vmem, size = 0x8000, scoped, tag = 'scratch operand']
  #allocation4 [shape = 'f32[64,8]{1,0:T(8,128)}', space=vmem, size = 0x8000, scoped, tag = 'scratch operand']
  %s0 = inlined_call_operand.vmem [shape: f32[2,4,64,1], index: 0, kind: input, shape index: {}]
  %s1 = inlined_call_operand.vmem [shape: f32[4,64,256], index: 1, kind: input, shape index: {}]
  %s2 = inlined_call_operand.vmem [shape: f32[8,256], index: 2, kind: input, shape index: {}]
  %s3 = inlined_call_operand.vmem [shape: f32[256,8], index: 3, kind: input, shape index: {}]
  %s4 = inlined_call_operand.hbm [shape: f32[2,256], index: 4, kind: output, shape index: {}]
  %s5 = sld [smem:[#allocation0]]
  $region65: #{tpu_custom_call.1} parent=0
    _
  %s7 = ssub.s32 1, %s5
  %s8 = scalar_select 0, %s7, %s5
  $region1: #{tpu_custom_call.1} parent=0
    #allocation5 [shape = 'u8[2048]{0}', space=vmem, size = 0x800, scoped, tag = 'output window, operand 0, single buffered']
    #allocation6 [shape = 's32[2]{0}', space=sflag, size = 0x8, scoped, tag = 'scoped memory for tpu_custom_call.1']
    %9 = vsyncpa [#allocation6], 0
    loop: start=0, step=1, limit=5
    $region2: #{tpu_custom_call.1} parent=1 // loop_pre_header
      _
    $region3: #{tpu_custom_call.1} parent=1 // loop_header
      %s11 = sphi 0, %s15
      %p12 = scmp.ge.s32.totalorder %s11, 5
      %s18 = sphi 0, %s30
      %s19 = sphi 0, %s26
      %s20 = sphi 0, %s18
      %s21 = sphi 0, %s19
      %s22 = sphi 0, %s20
      %s23 = sphi 0, %s21
      %s33 = sphi 0, %s35
      %s36 = sphi 0, %s33
      %s37 = sphi 0, %s36
      %s53 = sphi 0, %s37
      %s57 = sphi 0, %s57
      %s59 = sphi 0, %s57
      %s60 = sphi 0, %s59
      %s74 = sphi 0, %s60
      %s78 = sphi 0, %s78
      %s80 = sphi 0, %s78
      %s81 = sphi 0, %s80
      %s95 = sphi 0, %s81
      %s99 = sphi 0, %s99
      %s101 = sphi 0, %s99
      %s102 = sphi 0, %s101
      %s116 = sphi 0, %s102
      %s122 = sphi 0, %s124
      %s125 = sphi 0, %s122
      %s126 = sphi 0, %s125
      %s142 = sphi 0, %s126
    $region4: #{tpu_custom_call.1} parent=1 // loop_header_branch
      %14 = sbr.rel (%p12) target = $region8
    $region5: #{tpu_custom_call.1} parent=1 // loop_body
      %s16 = ssub.s32 %s11, 1
      %s17 = ssub.s32 %s11, 2
      %s24 = sadd.s32 1, %s19
      %p25 = scmp.ge.s32.totalorder %s24, 1
      %s26 = scalar_select %p25, 0, %s24
      %s27 = sadd.s32 1, %s18
      %s28 = scalar_select %p25, %s27, %s18
      %p29 = scmp.ge.s32.totalorder %s28, 3
      %s30 = scalar_select %p29, 0, %s28
      %s31 = ssub.s32 %s19, %s26
      %p32 = scmp.eq.s32.totalorder %s31, 0
      %s34 = sadd.s32 %s33, 1
      %s35 = scalar_select %p32, %s33, %s34
      %p38 = pneg %p32
      %p39 = scmp.eq.s32.totalorder %s11, 2
      %p40 = por %p38, %p39
      %p41 = scmp.ne.s32.totalorder %s33, %s36
      %p42 = scmp.eq.s32.totalorder %s11, 0
      %p43 = por %p41, %p42
      %p44 = scmp.ne.s32.totalorder %s33, %s36
      %p45 = scmp.eq.s32.totalorder %s16, 2
      %p46 = por %p44, %p45
      %p47 = scmp.ne.s32.totalorder %s36, %s37
      %p48 = scmp.eq.s32.totalorder %s16, 0
      %p49 = por %p47, %p48
      %p50 = scmp.ne.s32.totalorder %s36, %s37
      %p51 = scmp.eq.s32.totalorder %s17, 2
      %p52 = por %p50, %p51
      %p54 = scmp.ne.s32.totalorder %s37, %s53
      %p55 = scmp.eq.s32.totalorder %s17, 0
      %p56 = por %p54, %p55
      %s58 = sadd.s32 %s57, 1
      %p61 = scmp.eq.s32.totalorder %s11, 2
      %p62 = scmp.ne.s32.totalorder %s57, %s59
      %p63 = scmp.eq.s32.totalorder %s11, 0
      %p64 = por %p62, %p63
      %p65 = scmp.ne.s32.totalorder %s57, %s59
      %p66 = scmp.eq.s32.totalorder %s16, 2
      %p67 = por %p65, %p66
      %p68 = scmp.ne.s32.totalorder %s59, %s60
      %p69 = scmp.eq.s32.totalorder %s16, 0
      %p70 = por %p68, %p69
      %p71 = scmp.ne.s32.totalorder %s59, %s60
      %p72 = scmp.eq.s32.totalorder %s17, 2
      %p73 = por %p71, %p72
      %p75 = scmp.ne.s32.totalorder %s60, %s74
      %p76 = scmp.eq.s32.totalorder %s17, 0
      %p77 = por %p75, %p76
      %s79 = sadd.s32 %s78, 1
      %p82 = scmp.eq.s32.totalorder %s11, 2
      %p83 = scmp.ne.s32.totalorder %s78, %s80
      %p84 = scmp.eq.s32.totalorder %s11, 0
      %p85 = por %p83, %p84
      %p86 = scmp.ne.s32.totalorder %s78, %s80
      %p87 = scmp.eq.s32.totalorder %s16, 2
      %p88 = por %p86, %p87
      %p89 = scmp.ne.s32.totalorder %s80, %s81
      %p90 = scmp.eq.s32.totalorder %s16, 0
      %p91 = por %p89, %p90
      %p92 = scmp.ne.s32.totalorder %s80, %s81
      %p93 = scmp.eq.s32.totalorder %s17, 2
      %p94 = por %p92, %p93
      %p96 = scmp.ne.s32.totalorder %s81, %s95
      %p97 = scmp.eq.s32.totalorder %s17, 0
      %p98 = por %p96, %p97
      %s100 = sadd.s32 %s99, 1
      %p103 = scmp.eq.s32.totalorder %s11, 2
      %p104 = scmp.ne.s32.totalorder %s99, %s101
      %p105 = scmp.eq.s32.totalorder %s11, 0
      %p106 = por %p104, %p105
      %p107 = scmp.ne.s32.totalorder %s99, %s101
      %p108 = scmp.eq.s32.totalorder %s16, 2
      %p109 = por %p107, %p108
      %p110 = scmp.ne.s32.totalorder %s101, %s102
      %p111 = scmp.eq.s32.totalorder %s16, 0
      %p112 = por %p110, %p111
      %p113 = scmp.ne.s32.totalorder %s101, %s102
      %p114 = scmp.eq.s32.totalorder %s17, 2
      %p115 = por %p113, %p114
      %p117 = scmp.ne.s32.totalorder %s102, %s116
      %p118 = scmp.eq.s32.totalorder %s17, 0
      %p119 = por %p117, %p118
      %s120 = ssub.s32 %s19, %s26
      %p121 = scmp.eq.s32.totalorder %s120, 0
      %s123 = sadd.s32 %s122, 1
      %s124 = scalar_select %p121, %s122, %s123
      %p127 = pneg %p121
      %p128 = scmp.eq.s32.totalorder %s11, 2
      %p129 = por %p127, %p128
      %p130 = scmp.ne.s32.totalorder %s122, %s125
      %p131 = scmp.eq.s32.totalorder %s11, 0
      %p132 = por %p130, %p131
      %p133 = scmp.ne.s32.totalorder %s122, %s125
      %p134 = scmp.eq.s32.totalorder %s16, 2
      %p135 = por %p133, %p134
      %p136 = scmp.ne.s32.totalorder %s125, %s126
      %p137 = scmp.eq.s32.totalorder %s16, 0
      %p138 = por %p136, %p137
      %p139 = scmp.ne.s32.totalorder %s125, %s126
      %p140 = scmp.eq.s32.totalorder %s17, 2
      %p141 = por %p139, %p140
      %p143 = scmp.ne.s32.totalorder %s126, %s142
      %p144 = scmp.eq.s32.totalorder %s17, 0
      %p145 = por %p143, %p144
      %p146 = scmp.le.s32.totalorder 1, %s11
      %p147 = scmp.lt.s32.totalorder %s11, 4
      %p148 = pnand %p146, %p147
      %p149 = pneg %p148
      // Predicated region
      $region9: #{tpu_custom_call.1} parent=5 // pred_check
        _
      $region10: #{tpu_custom_call.1} parent=5 // pred_check_branch
        %151 = sbr.rel (%p148) target = $region12
      $region11: #{tpu_custom_call.1} parent=5 // pred_region
        %s152 = ssub.s32 %s11, 1
        // Predicated region
        $region13: #{tpu_custom_call.1} parent=11 // pred_check
          %p153 = pneg %p49
        $region14: #{tpu_custom_call.1} parent=11 // pred_check_branch
          %155 = sbr.rel (%p153) target = $region16
        $region15: #{tpu_custom_call.1} parent=11 // pred_region
          %s156 = smul.u32 2, %s21
          %p157 = scmp.lt.s32.totalorder %s156, 1
          %s158 = scalar_select %p157, %s156, 1
          %s159 = smul.addr %s158, 32
          %s160 = smul.addr %s159, 8
          %s161 = scalar_lea.vmem %s0, %s160
          %s162 = smul.u32 2, %s21
        $region16: #{tpu_custom_call.1} parent=11 // pred_fallthru
          _
        // Predicated region
        $region17: #{tpu_custom_call.1} parent=11 // pred_check
          %p163 = pneg %p70
        $region18: #{tpu_custom_call.1} parent=11 // pred_check_branch
          %165 = sbr.rel (%p163) target = $region20
        $region19: #{tpu_custom_call.1} parent=11 // pred_region
          _
        $region20: #{tpu_custom_call.1} parent=11 // pred_fallthru
          _
        // Predicated region
        $region21: #{tpu_custom_call.1} parent=11 // pred_check
          %p166 = pneg %p91
        $region22: #{tpu_custom_call.1} parent=11 // pred_check_branch
          %168 = sbr.rel (%p166) target = $region24
        $region23: #{tpu_custom_call.1} parent=11 // pred_region
          _
        $region24: #{tpu_custom_call.1} parent=11 // pred_fallthru
          _
        // Predicated region
        $region25: #{tpu_custom_call.1} parent=11 // pred_check
          %p169 = pneg %p112
        $region26: #{tpu_custom_call.1} parent=11 // pred_check_branch
          %171 = sbr.rel (%p169) target = $region28
        $region27: #{tpu_custom_call.1} parent=11 // pred_region
          _
        $region28: #{tpu_custom_call.1} parent=11 // pred_fallthru
          _
      $region12: #{tpu_custom_call.1} parent=5 // pred_fallthru
        _
      %p172 = scmp.lt.s32.totalorder %s11, 3
      // Predicated region
      $region29: #{tpu_custom_call.1} parent=5 // pred_check
        %p173 = pneg %p172
      $region30: #{tpu_custom_call.1} parent=5 // pred_check_branch
        %175 = sbr.rel (%p173) target = $region32
      $region31: #{tpu_custom_call.1} parent=5 // pred_region
        _
      $region32: #{tpu_custom_call.1} parent=5 // pred_fallthru
        _
      %p176 = scmp.le.s32.totalorder 1, %s11
      %p177 = scmp.lt.s32.totalorder %s11, 4
      %p178 = pnand %p176, %p177
      %p179 = pneg %p178
      // Predicated region
      $region33: #{tpu_custom_call.1} parent=5 // pred_check
        _
      $region34: #{tpu_custom_call.1} parent=5 // pred_check_branch
        %181 = sbr.rel (%p178) target = $region36
      $region35: #{tpu_custom_call.1} parent=5 // pred_region
        %s182 = ssub.s32 %s11, 1
        %s183 = smul.u32 2, %s21
        %p184 = scmp.lt.s32.totalorder %s183, 1
        %s185 = scalar_select %p184, %s183, 1
        %s186 = smul.addr %s185, 32
        %s187 = smul.addr %s186, 8
        %s188 = scalar_lea.vmem %s0, %s187
        %p189 = pneg %p49
        %p190 = pneg %p46
        %p191 = pneg %p70
        %p192 = pneg %p67
        %p193 = pneg %p91
        %p194 = pneg %p88
        %p195 = pneg %p112
        %p196 = pneg %p109
        %p197 = pneg %p138
        %p198 = pneg %p135
        %s199 = smul.u32 2, %s21
        %p200 = scmp.lt.s32.totalorder %s199, 1
        %s201 = scalar_select %p200, %s199, 1
        %s202 = smul.addr %s201, 32
        %s203 = smul.addr %s202, 8
        %s204 = scalar_lea.vmem %s0, %s203
        %s205 = smul.u32 2, %s21
        %p206 = scmp.eq.s32.totalorder %s20, 0
        %p207 = scmp.eq.s32.totalorder %s21, 0
        %p208 = pnand %p206, %p207
        %p209 = pneg %p208
        // Predicated region
        $region37: #{tpu_custom_call.1} parent=35 // pred_check
          _
        $region38: #{tpu_custom_call.1} parent=35 // pred_check_branch
          %211 = sbr.rel (%p208) target = $region40
        $region39: #{tpu_custom_call.1} parent=35 // pred_region
          %vm212 = vcmask 64512
          %213 = vst.msk [vmem:[#allocation3] sm:$0xff] %vm212, 0.0
          %214 = vst.msk [vmem:[#allocation3 + $0x8] sm:$0xff] %vm212, 0.0
          %215 = vst.msk [vmem:[#allocation3 + $0x10] sm:$0xff] %vm212, 0.0
          %216 = vst.msk [vmem:[#allocation3 + $0x18] sm:$0xff] %vm212, 0.0
          %217 = vst.msk [vmem:[#allocation3 + $0x20] sm:$0xff] %vm212, 0.0
          %218 = vst.msk [vmem:[#allocation3 + $0x28] sm:$0xff] %vm212, 0.0
          %219 = vst.msk [vmem:[#allocation3 + $0x30] sm:$0xff] %vm212, 0.0
          %220 = vst.msk [vmem:[#allocation3 + $0x38] sm:$0xff] %vm212, 0.0
        $region40: #{tpu_custom_call.1} parent=35 // pred_fallthru
          _
        // Predicated region
        $region41: #{tpu_custom_call.1} parent=35 // pred_check
          %p221 = pneg %p207
        $region42: #{tpu_custom_call.1} parent=35 // pred_check_branch
          %223 = sbr.rel (%p221) target = $region44
        $region43: #{tpu_custom_call.1} parent=35 // pred_region
          %vm224 = vcmask 64512
          %225 = vst.msk [vmem:[#allocation4] sm:$0xff] %vm224, 0.0
          %226 = vst.msk [vmem:[#allocation4 + $0x8] sm:$0xff] %vm224, 0.0
          %227 = vst.msk [vmem:[#allocation4 + $0x10] sm:$0xff] %vm224, 0.0
          %228 = vst.msk [vmem:[#allocation4 + $0x18] sm:$0xff] %vm224, 0.0
          %229 = vst.msk [vmem:[#allocation4 + $0x20] sm:$0xff] %vm224, 0.0
          %230 = vst.msk [vmem:[#allocation4 + $0x28] sm:$0xff] %vm224, 0.0
          %231 = vst.msk [vmem:[#allocation4 + $0x30] sm:$0xff] %vm224, 0.0
          %232 = vst.msk [vmem:[#allocation4 + $0x38] sm:$0xff] %vm224, 0.0
        $region44: #{tpu_custom_call.1} parent=35 // pred_fallthru
          _
        %v233 = vld [vmem:[%s204] sm:$0xff]
        %v234 = vld [vmem:[%s204 + $0x8] sm:$0xff]
        %v235 = vld [vmem:[%s204 + $0x10] sm:$0xff]
        %v236 = vld [vmem:[%s204 + $0x18] sm:$0xff]
        %v237 = vld [vmem:[%s204 + $0x20] sm:$0xff]
        %v238 = vld [vmem:[%s204 + $0x28] sm:$0xff]
        %v239 = vld [vmem:[%s204 + $0x30] sm:$0xff]
        %v240 = vld [vmem:[%s204 + $0x38] sm:$0xff]
        %v241 = vld [vmem:[%s204 + $0x100] sm:$0xff]
        %v242 = vld [vmem:[%s204 + $0x108] sm:$0xff]
        %v243 = vld [vmem:[%s204 + $0x110] sm:$0xff]
        %v244 = vld [vmem:[%s204 + $0x118] sm:$0xff]
        %v245 = vld [vmem:[%s204 + $0x120] sm:$0xff]
        %v246 = vld [vmem:[%s204 + $0x128] sm:$0xff]
        %v247 = vld [vmem:[%s204 + $0x130] sm:$0xff]
        %v248 = vld [vmem:[%s204 + $0x138] sm:$0xff]
        %v249 = vld [vmem:[%s1] sm:$0xff]
        %v250 = vld [vmem:[%s1 + $0x8] sm:$0xff]
        %v251 = vld [vmem:[%s1 + $0x10] sm:$0xff]
        %v252 = vld [vmem:[%s1 + $0x18] sm:$0xff]
        %v253 = vld [vmem:[%s1 + $0x20] sm:$0xff]
        %v254 = vld [vmem:[%s1 + $0x28] sm:$0xff]
        %v255 = vld [vmem:[%s1 + $0x30] sm:$0xff]
        %v256 = vld [vmem:[%s1 + $0x38] sm:$0xff]
        %v257 = vld [vmem:[%s1 + $0x40] sm:$0xff]
        %v258 = vld [vmem:[%s1 + $0x48] sm:$0xff]
        %v259 = vld [vmem:[%s1 + $0x50] sm:$0xff]
        %v260 = vld [vmem:[%s1 + $0x58] sm:$0xff]
        %v261 = vld [vmem:[%s1 + $0x60] sm:$0xff]
        %v262 = vld [vmem:[%s1 + $0x68] sm:$0xff]
        %v263 = vld [vmem:[%s1 + $0x70] sm:$0xff]
        %v264 = vld [vmem:[%s1 + $0x78] sm:$0xff]
        %266 = vset.pattern.permute.xlu0 0
        %267 = vperm.xlu0 %266, %v233
        %v268 = vpop.permute.xlu0 %267
        %271 = vset.pattern.permute.xlu0 0
        %272 = vperm.xlu0 %271, %v234
        %v273 = vpop.permute.xlu0 %272
        %276 = vset.pattern.permute.xlu0 0
        %277 = vperm.xlu0 %276, %v235
        %v278 = vpop.permute.xlu0 %277
        %281 = vset.pattern.permute.xlu0 0
        %282 = vperm.xlu0 %281, %v236
        %v283 = vpop.permute.xlu0 %282
        %286 = vset.pattern.permute.xlu0 0
        %287 = vperm.xlu0 %286, %v237
        %v288 = vpop.permute.xlu0 %287
        %291 = vset.pattern.permute.xlu0 0
        %292 = vperm.xlu0 %291, %v238
        %v293 = vpop.permute.xlu0 %292
        %296 = vset.pattern.permute.xlu0 0
        %297 = vperm.xlu0 %296, %v239
        %v298 = vpop.permute.xlu0 %297
        %301 = vset.pattern.permute.xlu0 0
        %302 = vperm.xlu0 %301, %v240
        %v303 = vpop.permute.xlu0 %302
        %306 = vset.pattern.permute.xlu0 0
        %307 = vperm.xlu0 %306, %v241
        %v308 = vpop.permute.xlu0 %307
        %311 = vset.pattern.permute.xlu0 0
        %312 = vperm.xlu0 %311, %v242
        %v313 = vpop.permute.xlu0 %312
        %316 = vset.pattern.permute.xlu0 0
        %317 = vperm.xlu0 %316, %v243
        %v318 = vpop.permute.xlu0 %317
        %321 = vset.pattern.permute.xlu0 0
        %322 = vperm.xlu0 %321, %v244
        %v323 = vpop.permute.xlu0 %322
        %326 = vset.pattern.permute.xlu0 0
        %327 = vperm.xlu0 %326, %v245
        %v328 = vpop.permute.xlu0 %327
        %331 = vset.pattern.permute.xlu0 0
        %332 = vperm.xlu0 %331, %v246
        %v333 = vpop.permute.xlu0 %332
        %336 = vset.pattern.permute.xlu0 0
        %337 = vperm.xlu0 %336, %v247
        %v338 = vpop.permute.xlu0 %337
        %341 = vset.pattern.permute.xlu0 0
        %342 = vperm.xlu0 %341, %v248
        %v343 = vpop.permute.xlu0 %342
        %v345 = vmul.f32 %v268, %v249
        %v346 = vmul.f32 %v268, %v250
        %v347 = vmul.f32 %v273, %v251
        %v348 = vmul.f32 %v273, %v252
        %v349 = vmul.f32 %v278, %v253
        %v350 = vmul.f32 %v278, %v254
        %v351 = vmul.f32 %v283, %v255
        %v352 = vmul.f32 %v283, %v256
        %v353 = vmul.f32 %v288, %v257
        %v354 = vmul.f32 %v288, %v258
        %v355 = vmul.f32 %v293, %v259
        %v356 = vmul.f32 %v293, %v260
        %v357 = vmul.f32 %v298, %v261
        %v358 = vmul.f32 %v298, %v262
        %v359 = vmul.f32 %v303, %v263
        %v360 = vmul.f32 %v303, %v264
        %v361 = vmul.f32 %v308, %v249
        %v362 = vmul.f32 %v308, %v250
        %v363 = vmul.f32 %v313, %v251
        %v364 = vmul.f32 %v313, %v252
        %v365 = vmul.f32 %v318, %v253
        %v366 = vmul.f32 %v318, %v254
        %v367 = vmul.f32 %v323, %v255
        %v368 = vmul.f32 %v323, %v256
        %v369 = vmul.f32 %v328, %v257
        %v370 = vmul.f32 %v328, %v258
        %v371 = vmul.f32 %v333, %v259
        %v372 = vmul.f32 %v333, %v260
        %v373 = vmul.f32 %v338, %v261
        %v374 = vmul.f32 %v338, %v262
        %v375 = vmul.f32 %v343, %v263
        %v376 = vmul.f32 %v343, %v264
        %s377 = scalar_lea.vmem %s204, 64
        %v378 = vld [vmem:[%s377] sm:$0xff]
        %v379 = vld [vmem:[%s377 + $0x8] sm:$0xff]
        %v380 = vld [vmem:[%s377 + $0x10] sm:$0xff]
        %v381 = vld [vmem:[%s377 + $0x18] sm:$0xff]
        %v382 = vld [vmem:[%s377 + $0x20] sm:$0xff]
        %v383 = vld [vmem:[%s377 + $0x28] sm:$0xff]
        %v384 = vld [vmem:[%s377 + $0x30] sm:$0xff]
        %v385 = vld [vmem:[%s377 + $0x38] sm:$0xff]
        %v386 = vld [vmem:[%s377 + $0x100] sm:$0xff]
        %v387 = vld [vmem:[%s377 + $0x108] sm:$0xff]
        %v388 = vld [vmem:[%s377 + $0x110] sm:$0xff]
        %v389 = vld [vmem:[%s377 + $0x118] sm:$0xff]
        %v390 = vld [vmem:[%s377 + $0x120] sm:$0xff]
        %v391 = vld [vmem:[%s377 + $0x128] sm:$0xff]
        %v392 = vld [vmem:[%s377 + $0x130] sm:$0xff]
        %v393 = vld [vmem:[%s377 + $0x138] sm:$0xff]
        %s394 = scalar_lea.vmem %s1, 128
        %v395 = vld [vmem:[%s394] sm:$0xff]
        %v396 = vld [vmem:[%s394 + $0x8] sm:$0xff]
        %v397 = vld [vmem:[%s394 + $0x10] sm:$0xff]
        %v398 = vld [vmem:[%s394 + $0x18] sm:$0xff]
        %v399 = vld [vmem:[%s394 + $0x20] sm:$0xff]
        %v400 = vld [vmem:[%s394 + $0x28] sm:$0xff]
        %v401 = vld [vmem:[%s394 + $0x30] sm:$0xff]
        %v402 = vld [vmem:[%s394 + $0x38] sm:$0xff]
        %v403 = vld [vmem:[%s394 + $0x40] sm:$0xff]
        %v404 = vld [vmem:[%s394 + $0x48] sm:$0xff]
        %v405 = vld [vmem:[%s394 + $0x50] sm:$0xff]
        %v406 = vld [vmem:[%s394 + $0x58] sm:$0xff]
        %v407 = vld [vmem:[%s394 + $0x60] sm:$0xff]
        %v408 = vld [vmem:[%s394 + $0x68] sm:$0xff]
        %v409 = vld [vmem:[%s394 + $0x70] sm:$0xff]
        %v410 = vld [vmem:[%s394 + $0x78] sm:$0xff]
        %412 = vset.pattern.permute.xlu0 0
        %413 = vperm.xlu0 %412, %v378
        %v414 = vpop.permute.xlu0 %413
        %417 = vset.pattern.permute.xlu0 0
        %418 = vperm.xlu0 %417, %v379
        %v419 = vpop.permute.xlu0 %418
        %422 = vset.pattern.permute.xlu0 0
        %423 = vperm.xlu0 %422, %v380
        %v424 = vpop.permute.xlu0 %423
        %427 = vset.pattern.permute.xlu0 0
        %428 = vperm.xlu0 %427, %v381
        %v429 = vpop.permute.xlu0 %428
        %432 = vset.pattern.permute.xlu0 0
        %433 = vperm.xlu0 %432, %v382
        %v434 = vpop.permute.xlu0 %433
        %437 = vset.pattern.permute.xlu0 0
        %438 = vperm.xlu0 %437, %v383
        %v439 = vpop.permute.xlu0 %438
        %442 = vset.pattern.permute.xlu0 0
        %443 = vperm.xlu0 %442, %v384
        %v444 = vpop.permute.xlu0 %443
        %447 = vset.pattern.permute.xlu0 0
        %448 = vperm.xlu0 %447, %v385
        %v449 = vpop.permute.xlu0 %448
        %452 = vset.pattern.permute.xlu0 0
        %453 = vperm.xlu0 %452, %v386
        %v454 = vpop.permute.xlu0 %453
        %457 = vset.pattern.permute.xlu0 0
        %458 = vperm.xlu0 %457, %v387
        %v459 = vpop.permute.xlu0 %458
        %462 = vset.pattern.permute.xlu0 0
        %463 = vperm.xlu0 %462, %v388
        %v464 = vpop.permute.xlu0 %463
        %467 = vset.pattern.permute.xlu0 0
        %468 = vperm.xlu0 %467, %v389
        %v469 = vpop.permute.xlu0 %468
        %472 = vset.pattern.permute.xlu0 0
        %473 = vperm.xlu0 %472, %v390
        %v474 = vpop.permute.xlu0 %473
        %477 = vset.pattern.permute.xlu0 0
        %478 = vperm.xlu0 %477, %v391
        %v479 = vpop.permute.xlu0 %478
        %482 = vset.pattern.permute.xlu0 0
        %483 = vperm.xlu0 %482, %v392
        %v484 = vpop.permute.xlu0 %483
        %487 = vset.pattern.permute.xlu0 0
        %488 = vperm.xlu0 %487, %v393
        %v489 = vpop.permute.xlu0 %488
        %v491 = vmul.f32 %v414, %v395
        %v492 = vmul.f32 %v414, %v396
        %v493 = vmul.f32 %v419, %v397
        %v494 = vmul.f32 %v419, %v398
        %v495 = vmul.f32 %v424, %v399
        %v496 = vmul.f32 %v424, %v400
        %v497 = vmul.f32 %v429, %v401
        %v498 = vmul.f32 %v429, %v402
        %v499 = vmul.f32 %v434, %v403
        %v500 = vmul.f32 %v434, %v404
        %v501 = vmul.f32 %v439, %v405
        %v502 = vmul.f32 %v439, %v406
        %v503 = vmul.f32 %v444, %v407
        %v504 = vmul.f32 %v444, %v408
        %v505 = vmul.f32 %v449, %v409
        %v506 = vmul.f32 %v449, %v410
        %v507 = vmul.f32 %v454, %v395
        %v508 = vmul.f32 %v454, %v396
        %v509 = vmul.f32 %v459, %v397
        %v510 = vmul.f32 %v459, %v398
        %v511 = vmul.f32 %v464, %v399
        %v512 = vmul.f32 %v464, %v400
        %v513 = vmul.f32 %v469, %v401
        %v514 = vmul.f32 %v469, %v402
        %v515 = vmul.f32 %v474, %v403
        %v516 = vmul.f32 %v474, %v404
        %v517 = vmul.f32 %v479, %v405
        %v518 = vmul.f32 %v479, %v406
        %v519 = vmul.f32 %v484, %v407
        %v520 = vmul.f32 %v484, %v408
        %v521 = vmul.f32 %v489, %v409
        %v522 = vmul.f32 %v489, %v410
        %v523 = vadd.f32 %v345, %v491
        %v524 = vadd.f32 %v346, %v492
        %v525 = vadd.f32 %v347, %v493
        %v526 = vadd.f32 %v348, %v494
        %v527 = vadd.f32 %v349, %v495
        %v528 = vadd.f32 %v350, %v496
        %v529 = vadd.f32 %v351, %v497
        %v530 = vadd.f32 %v352, %v498
        %v531 = vadd.f32 %v353, %v499
        %v532 = vadd.f32 %v354, %v500
        %v533 = vadd.f32 %v355, %v501
        %v534 = vadd.f32 %v356, %v502
        %v535 = vadd.f32 %v357, %v503
        %v536 = vadd.f32 %v358, %v504
        %v537 = vadd.f32 %v359, %v505
        %v538 = vadd.f32 %v360, %v506
        %v539 = vadd.f32 %v361, %v507
        %v540 = vadd.f32 %v362, %v508
        %v541 = vadd.f32 %v363, %v509
        %v542 = vadd.f32 %v364, %v510
        %v543 = vadd.f32 %v365, %v511
        %v544 = vadd.f32 %v366, %v512
        %v545 = vadd.f32 %v367, %v513
        %v546 = vadd.f32 %v368, %v514
        %v547 = vadd.f32 %v369, %v515
        %v548 = vadd.f32 %v370, %v516
        %v549 = vadd.f32 %v371, %v517
        %v550 = vadd.f32 %v372, %v518
        %v551 = vadd.f32 %v373, %v519
        %v552 = vadd.f32 %v374, %v520
        %v553 = vadd.f32 %v375, %v521
        %v554 = vadd.f32 %v376, %v522
        %s555 = scalar_lea.vmem %s204, 128
        %v556 = vld [vmem:[%s555] sm:$0xff]
        %v557 = vld [vmem:[%s555 + $0x8] sm:$0xff]
        %v558 = vld [vmem:[%s555 + $0x10] sm:$0xff]
        %v559 = vld [vmem:[%s555 + $0x18] sm:$0xff]
        %v560 = vld [vmem:[%s555 + $0x20] sm:$0xff]
        %v561 = vld [vmem:[%s555 + $0x28] sm:$0xff]
        %v562 = vld [vmem:[%s555 + $0x30] sm:$0xff]
        %v563 = vld [vmem:[%s555 + $0x38] sm:$0xff]
        %v564 = vld [vmem:[%s555 + $0x100] sm:$0xff]
        %v565 = vld [vmem:[%s555 + $0x108] sm:$0xff]
        %v566 = vld [vmem:[%s555 + $0x110] sm:$0xff]
        %v567 = vld [vmem:[%s555 + $0x118] sm:$0xff]
        %v568 = vld [vmem:[%s555 + $0x120] sm:$0xff]
        %v569 = vld [vmem:[%s555 + $0x128] sm:$0xff]
        %v570 = vld [vmem:[%s555 + $0x130] sm:$0xff]
        %v571 = vld [vmem:[%s555 + $0x138] sm:$0xff]
        %s572 = scalar_lea.vmem %s1, 256
        %v573 = vld [vmem:[%s572] sm:$0xff]
        %v574 = vld [vmem:[%s572 + $0x8] sm:$0xff]
        %v575 = vld [vmem:[%s572 + $0x10] sm:$0xff]
        %v576 = vld [vmem:[%s572 + $0x18] sm:$0xff]
        %v577 = vld [vmem:[%s572 + $0x20] sm:$0xff]
        %v578 = vld [vmem:[%s572 + $0x28] sm:$0xff]
        %v579 = vld [vmem:[%s572 + $0x30] sm:$0xff]
        %v580 = vld [vmem:[%s572 + $0x38] sm:$0xff]
        %v581 = vld [vmem:[%s572 + $0x40] sm:$0xff]
        %v582 = vld [vmem:[%s572 + $0x48] sm:$0xff]
        %v583 = vld [vmem:[%s572 + $0x50] sm:$0xff]
        %v584 = vld [vmem:[%s572 + $0x58] sm:$0xff]
        %v585 = vld [vmem:[%s572 + $0x60] sm:$0xff]
        %v586 = vld [vmem:[%s572 + $0x68] sm:$0xff]
        %v587 = vld [vmem:[%s572 + $0x70] sm:$0xff]
        %v588 = vld [vmem:[%s572 + $0x78] sm:$0xff]
        %590 = vset.pattern.permute.xlu0 0
        %591 = vperm.xlu0 %590, %v556
        %v592 = vpop.permute.xlu0 %591
        %595 = vset.pattern.permute.xlu0 0
        %596 = vperm.xlu0 %595, %v557
        %v597 = vpop.permute.xlu0 %596
        %600 = vset.pattern.permute.xlu0 0
        %601 = vperm.xlu0 %600, %v558
        %v602 = vpop.permute.xlu0 %601
        %605 = vset.pattern.permute.xlu0 0
        %606 = vperm.xlu0 %605, %v559
        %v607 = vpop.permute.xlu0 %606
        %610 = vset.pattern.permute.xlu0 0
        %611 = vperm.xlu0 %610, %v560
        %v612 = vpop.permute.xlu0 %611
        %615 = vset.pattern.permute.xlu0 0
        %616 = vperm.xlu0 %615, %v561
        %v617 = vpop.permute.xlu0 %616
        %620 = vset.pattern.permute.xlu0 0
        %621 = vperm.xlu0 %620, %v562
        %v622 = vpop.permute.xlu0 %621
        %625 = vset.pattern.permute.xlu0 0
        %626 = vperm.xlu0 %625, %v563
        %v627 = vpop.permute.xlu0 %626
        %630 = vset.pattern.permute.xlu0 0
        %631 = vperm.xlu0 %630, %v564
        %v632 = vpop.permute.xlu0 %631
        %635 = vset.pattern.permute.xlu0 0
        %636 = vperm.xlu0 %635, %v565
        %v637 = vpop.permute.xlu0 %636
        %640 = vset.pattern.permute.xlu0 0
        %641 = vperm.xlu0 %640, %v566
        %v642 = vpop.permute.xlu0 %641
        %645 = vset.pattern.permute.xlu0 0
        %646 = vperm.xlu0 %645, %v567
        %v647 = vpop.permute.xlu0 %646
        %650 = vset.pattern.permute.xlu0 0
        %651 = vperm.xlu0 %650, %v568
        %v652 = vpop.permute.xlu0 %651
        %655 = vset.pattern.permute.xlu0 0
        %656 = vperm.xlu0 %655, %v569
        %v657 = vpop.permute.xlu0 %656
        %660 = vset.pattern.permute.xlu0 0
        %661 = vperm.xlu0 %660, %v570
        %v662 = vpop.permute.xlu0 %661
        %665 = vset.pattern.permute.xlu0 0
        %666 = vperm.xlu0 %665, %v571
        %v667 = vpop.permute.xlu0 %666
        %v669 = vmul.f32 %v592, %v573
        %v670 = vmul.f32 %v592, %v574
        %v671 = vmul.f32 %v597, %v575
        %v672 = vmul.f32 %v597, %v576
        %v673 = vmul.f32 %v602, %v577
        %v674 = vmul.f32 %v602, %v578
        %v675 = vmul.f32 %v607, %v579
        %v676 = vmul.f32 %v607, %v580
        %v677 = vmul.f32 %v612, %v581
        %v678 = vmul.f32 %v612, %v582
        %v679 = vmul.f32 %v617, %v583
        %v680 = vmul.f32 %v617, %v584
        %v681 = vmul.f32 %v622, %v585
        %v682 = vmul.f32 %v622, %v586
        %v683 = vmul.f32 %v627, %v587
        %v684 = vmul.f32 %v627, %v588
        %v685 = vmul.f32 %v632, %v573
        %v686 = vmul.f32 %v632, %v574
        %v687 = vmul.f32 %v637, %v575
        %v688 = vmul.f32 %v637, %v576
        %v689 = vmul.f32 %v642, %v577
        %v690 = vmul.f32 %v642, %v578
        %v691 = vmul.f32 %v647, %v579
        %v692 = vmul.f32 %v647, %v580
        %v693 = vmul.f32 %v652, %v581
        %v694 = vmul.f32 %v652, %v582
        %v695 = vmul.f32 %v657, %v583
        %v696 = vmul.f32 %v657, %v584
        %v697 = vmul.f32 %v662, %v585
        %v698 = vmul.f32 %v662, %v586
        %v699 = vmul.f32 %v667, %v587
        %v700 = vmul.f32 %v667, %v588
        %v701 = vadd.f32 %v523, %v669
        %v702 = vadd.f32 %v524, %v670
        %v703 = vadd.f32 %v525, %v671
        %v704 = vadd.f32 %v526, %v672
        %v705 = vadd.f32 %v527, %v673
        %v706 = vadd.f32 %v528, %v674
        %v707 = vadd.f32 %v529, %v675
        %v708 = vadd.f32 %v530, %v676
        %v709 = vadd.f32 %v531, %v677
        %v710 = vadd.f32 %v532, %v678
        %v711 = vadd.f32 %v533, %v679
        %v712 = vadd.f32 %v534, %v680
        %v713 = vadd.f32 %v535, %v681
        %v714 = vadd.f32 %v536, %v682
        %v715 = vadd.f32 %v537, %v683
        %v716 = vadd.f32 %v538, %v684
        %v717 = vadd.f32 %v539, %v685
        %v718 = vadd.f32 %v540, %v686
        %v719 = vadd.f32 %v541, %v687
        %v720 = vadd.f32 %v542, %v688
        %v721 = vadd.f32 %v543, %v689
        %v722 = vadd.f32 %v544, %v690
        %v723 = vadd.f32 %v545, %v691
        %v724 = vadd.f32 %v546, %v692
        %v725 = vadd.f32 %v547, %v693
        %v726 = vadd.f32 %v548, %v694
        %v727 = vadd.f32 %v549, %v695
        %v728 = vadd.f32 %v550, %v696
        %v729 = vadd.f32 %v551, %v697
        %v730 = vadd.f32 %v552, %v698
        %v731 = vadd.f32 %v553, %v699
        %v732 = vadd.f32 %v554, %v700
        %s733 = scalar_lea.vmem %s204, 192
        %v734 = vld [vmem:[%s733] sm:$0xff]
        %v735 = vld [vmem:[%s733 + $0x8] sm:$0xff]
        %v736 = vld [vmem:[%s733 + $0x10] sm:$0xff]
        %v737 = vld [vmem:[%s733 + $0x18] sm:$0xff]
        %v738 = vld [vmem:[%s733 + $0x20] sm:$0xff]
        %v739 = vld [vmem:[%s733 + $0x28] sm:$0xff]
        %v740 = vld [vmem:[%s733 + $0x30] sm:$0xff]
        %v741 = vld [vmem:[%s733 + $0x38] sm:$0xff]
        %v742 = vld [vmem:[%s733 + $0x100] sm:$0xff]
        %v743 = vld [vmem:[%s733 + $0x108] sm:$0xff]
        %v744 = vld [vmem:[%s733 + $0x110] sm:$0xff]
        %v745 = vld [vmem:[%s733 + $0x118] sm:$0xff]
        %v746 = vld [vmem:[%s733 + $0x120] sm:$0xff]
        %v747 = vld [vmem:[%s733 + $0x128] sm:$0xff]
        %v748 = vld [vmem:[%s733 + $0x130] sm:$0xff]
        %v749 = vld [vmem:[%s733 + $0x138] sm:$0xff]
        %s750 = scalar_lea.vmem %s1, 384
        %v751 = vld [vmem:[%s750] sm:$0xff]
        %v752 = vld [vmem:[%s750 + $0x8] sm:$0xff]
        %v753 = vld [vmem:[%s750 + $0x10] sm:$0xff]
        %v754 = vld [vmem:[%s750 + $0x18] sm:$0xff]
        %v755 = vld [vmem:[%s750 + $0x20] sm:$0xff]
        %v756 = vld [vmem:[%s750 + $0x28] sm:$0xff]
        %v757 = vld [vmem:[%s750 + $0x30] sm:$0xff]
        %v758 = vld [vmem:[%s750 + $0x38] sm:$0xff]
        %v759 = vld [vmem:[%s750 + $0x40] sm:$0xff]
        %v760 = vld [vmem:[%s750 + $0x48] sm:$0xff]
        %v761 = vld [vmem:[%s750 + $0x50] sm:$0xff]
        %v762 = vld [vmem:[%s750 + $0x58] sm:$0xff]
        %v763 = vld [vmem:[%s750 + $0x60] sm:$0xff]
        %v764 = vld [vmem:[%s750 + $0x68] sm:$0xff]
        %v765 = vld [vmem:[%s750 + $0x70] sm:$0xff]
        %v766 = vld [vmem:[%s750 + $0x78] sm:$0xff]
        %768 = vset.pattern.permute.xlu0 0
        %769 = vperm.xlu0 %768, %v734
        %v770 = vpop.permute.xlu0 %769
        %773 = vset.pattern.permute.xlu0 0
        %774 = vperm.xlu0 %773, %v735
        %v775 = vpop.permute.xlu0 %774
        %778 = vset.pattern.permute.xlu0 0
        %779 = vperm.xlu0 %778, %v736
        %v780 = vpop.permute.xlu0 %779
        %783 = vset.pattern.permute.xlu0 0
        %784 = vperm.xlu0 %783, %v737
        %v785 = vpop.permute.xlu0 %784
        %788 = vset.pattern.permute.xlu0 0
        %789 = vperm.xlu0 %788, %v738
        %v790 = vpop.permute.xlu0 %789
        %793 = vset.pattern.permute.xlu0 0
        %794 = vperm.xlu0 %793, %v739
        %v795 = vpop.permute.xlu0 %794
        %798 = vset.pattern.permute.xlu0 0
        %799 = vperm.xlu0 %798, %v740
        %v800 = vpop.permute.xlu0 %799
        %803 = vset.pattern.permute.xlu0 0
        %804 = vperm.xlu0 %803, %v741
        %v805 = vpop.permute.xlu0 %804
        %808 = vset.pattern.permute.xlu0 0
        %809 = vperm.xlu0 %808, %v742
        %v810 = vpop.permute.xlu0 %809
        %813 = vset.pattern.permute.xlu0 0
        %814 = vperm.xlu0 %813, %v743
        %v815 = vpop.permute.xlu0 %814
        %818 = vset.pattern.permute.xlu0 0
        %819 = vperm.xlu0 %818, %v744
        %v820 = vpop.permute.xlu0 %819
        %823 = vset.pattern.permute.xlu0 0
        %824 = vperm.xlu0 %823, %v745
        %v825 = vpop.permute.xlu0 %824
        %828 = vset.pattern.permute.xlu0 0
        %829 = vperm.xlu0 %828, %v746
        %v830 = vpop.permute.xlu0 %829
        %833 = vset.pattern.permute.xlu0 0
        %834 = vperm.xlu0 %833, %v747
        %v835 = vpop.permute.xlu0 %834
        %838 = vset.pattern.permute.xlu0 0
        %839 = vperm.xlu0 %838, %v748
        %v840 = vpop.permute.xlu0 %839
        %843 = vset.pattern.permute.xlu0 0
        %844 = vperm.xlu0 %843, %v749
        %v845 = vpop.permute.xlu0 %844
        %v847 = vmul.f32 %v770, %v751
        %v848 = vmul.f32 %v770, %v752
        %v849 = vmul.f32 %v775, %v753
        %v850 = vmul.f32 %v775, %v754
        %v851 = vmul.f32 %v780, %v755
        %v852 = vmul.f32 %v780, %v756
        %v853 = vmul.f32 %v785, %v757
        %v854 = vmul.f32 %v785, %v758
        %v855 = vmul.f32 %v790, %v759
        %v856 = vmul.f32 %v790, %v760
        %v857 = vmul.f32 %v795, %v761
        %v858 = vmul.f32 %v795, %v762
        %v859 = vmul.f32 %v800, %v763
        %v860 = vmul.f32 %v800, %v764
        %v861 = vmul.f32 %v805, %v765
        %v862 = vmul.f32 %v805, %v766
        %v863 = vmul.f32 %v810, %v751
        %v864 = vmul.f32 %v810, %v752
        %v865 = vmul.f32 %v815, %v753
        %v866 = vmul.f32 %v815, %v754
        %v867 = vmul.f32 %v820, %v755
        %v868 = vmul.f32 %v820, %v756
        %v869 = vmul.f32 %v825, %v757
        %v870 = vmul.f32 %v825, %v758
        %v871 = vmul.f32 %v830, %v759
        %v872 = vmul.f32 %v830, %v760
        %v873 = vmul.f32 %v835, %v761
        %v874 = vmul.f32 %v835, %v762
        %v875 = vmul.f32 %v840, %v763
        %v876 = vmul.f32 %v840, %v764
        %v877 = vmul.f32 %v845, %v765
        %v878 = vmul.f32 %v845, %v766
        %v879 = vadd.f32 %v701, %v847
        %v880 = vadd.f32 %v702, %v848
        %v881 = vadd.f32 %v703, %v849
        %v882 = vadd.f32 %v704, %v850
        %v883 = vadd.f32 %v705, %v851
        %v884 = vadd.f32 %v706, %v852
        %v885 = vadd.f32 %v707, %v853
        %v886 = vadd.f32 %v708, %v854
        %v887 = vadd.f32 %v709, %v855
        %v888 = vadd.f32 %v710, %v856
        %v889 = vadd.f32 %v711, %v857
        %v890 = vadd.f32 %v712, %v858
        %v891 = vadd.f32 %v713, %v859
        %v892 = vadd.f32 %v714, %v860
        %v893 = vadd.f32 %v715, %v861
        %v894 = vadd.f32 %v716, %v862
        %v895 = vadd.f32 %v717, %v863
        %v896 = vadd.f32 %v718, %v864
        %v897 = vadd.f32 %v719, %v865
        %v898 = vadd.f32 %v720, %v866
        %v899 = vadd.f32 %v721, %v867
        %v900 = vadd.f32 %v722, %v868
        %v901 = vadd.f32 %v723, %v869
        %v902 = vadd.f32 %v724, %v870
        %v903 = vadd.f32 %v725, %v871
        %v904 = vadd.f32 %v726, %v872
        %v905 = vadd.f32 %v727, %v873
        %v906 = vadd.f32 %v728, %v874
        %v907 = vadd.f32 %v729, %v875
        %v908 = vadd.f32 %v730, %v876
        %v909 = vadd.f32 %v731, %v877
        %v910 = vadd.f32 %v732, %v878
        %911 = vst [vmem:[#allocation2] sm:$0xff] %v879
        %912 = vst [vmem:[#allocation2 + $0x8] sm:$0xff] %v880
        %913 = vst [vmem:[#allocation2 + $0x10] sm:$0xff] %v881
        %914 = vst [vmem:[#allocation2 + $0x18] sm:$0xff] %v882
        %915 = vst [vmem:[#allocation2 + $0x20] sm:$0xff] %v883
        %916 = vst [vmem:[#allocation2 + $0x28] sm:$0xff] %v884
        %917 = vst [vmem:[#allocation2 + $0x30] sm:$0xff] %v885
        %918 = vst [vmem:[#allocation2 + $0x38] sm:$0xff] %v886
        %919 = vst [vmem:[#allocation2 + $0x40] sm:$0xff] %v887
        %920 = vst [vmem:[#allocation2 + $0x48] sm:$0xff] %v888
        %921 = vst [vmem:[#allocation2 + $0x50] sm:$0xff] %v889
        %922 = vst [vmem:[#allocation2 + $0x58] sm:$0xff] %v890
        %923 = vst [vmem:[#allocation2 + $0x60] sm:$0xff] %v891
        %924 = vst [vmem:[#allocation2 + $0x68] sm:$0xff] %v892
        %925 = vst [vmem:[#allocation2 + $0x70] sm:$0xff] %v893
        %926 = vst [vmem:[#allocation2 + $0x78] sm:$0xff] %v894
        %927 = vst [vmem:[#allocation2 + $0x80] sm:$0xff] %v895
        %928 = vst [vmem:[#allocation2 + $0x88] sm:$0xff] %v896
        %929 = vst [vmem:[#allocation2 + $0x90] sm:$0xff] %v897
        %930 = vst [vmem:[#allocation2 + $0x98] sm:$0xff] %v898
        %931 = vst [vmem:[#allocation2 + $0xa0] sm:$0xff] %v899
        %932 = vst [vmem:[#allocation2 + $0xa8] sm:$0xff] %v900
        %933 = vst [vmem:[#allocation2 + $0xb0] sm:$0xff] %v901
        %934 = vst [vmem:[#allocation2 + $0xb8] sm:$0xff] %v902
        %935 = vst [vmem:[#allocation2 + $0xc0] sm:$0xff] %v903
        %936 = vst [vmem:[#allocation2 + $0xc8] sm:$0xff] %v904
        %937 = vst [vmem:[#allocation2 + $0xd0] sm:$0xff] %v905
        %938 = vst [vmem:[#allocation2 + $0xd8] sm:$0xff] %v906
        %939 = vst [vmem:[#allocation2 + $0xe0] sm:$0xff] %v907
        %940 = vst [vmem:[#allocation2 + $0xe8] sm:$0xff] %v908
        %941 = vst [vmem:[#allocation2 + $0xf0] sm:$0xff] %v909
        %942 = vst [vmem:[#allocation2 + $0xf8] sm:$0xff] %v910
        %v943 = vld [vmem:[#allocation3] sm:$0xff]
        %v944 = vld [vmem:[#allocation3 + $0x8] sm:$0xff]
        %v945 = vld [vmem:[#allocation3 + $0x10] sm:$0xff]
        %v946 = vld [vmem:[#allocation3 + $0x18] sm:$0xff]
        %v947 = vld [vmem:[#allocation3 + $0x20] sm:$0xff]
        %v948 = vld [vmem:[#allocation3 + $0x28] sm:$0xff]
        %v949 = vld [vmem:[#allocation3 + $0x30] sm:$0xff]
        %v950 = vld [vmem:[#allocation3 + $0x38] sm:$0xff]
        %vm951 = vcmask 64512
        %v952 = vsel %vm951, %v943, -inf
        %953 = vmax.xlane.f32.xlu0 %v952
        %v954 = vpop.xlane.xlu0 %953
        %v955 = vsel %vm951, %v944, -inf
        %956 = vmax.xlane.f32.xlu0 %v955
        %v957 = vpop.xlane.xlu0 %956
        %v958 = vsel %vm951, %v945, -inf
        %959 = vmax.xlane.f32.xlu0 %v958
        %v960 = vpop.xlane.xlu0 %959
        %v961 = vsel %vm951, %v946, -inf
        %962 = vmax.xlane.f32.xlu0 %v961
        %v963 = vpop.xlane.xlu0 %962
        %v964 = vsel %vm951, %v947, -inf
        %965 = vmax.xlane.f32.xlu0 %v964
        %v966 = vpop.xlane.xlu0 %965
        %v967 = vsel %vm951, %v948, -inf
        %968 = vmax.xlane.f32.xlu0 %v967
        %v969 = vpop.xlane.xlu0 %968
        %v970 = vsel %vm951, %v949, -inf
        %971 = vmax.xlane.f32.xlu0 %v970
        %v972 = vpop.xlane.xlu0 %971
        %v973 = vsel %vm951, %v950, -inf
        %974 = vmax.xlane.f32.xlu0 %v973
        %v975 = vpop.xlane.xlu0 %974
        %v976 = vsub.f32 %v943, %v954
        %v977 = vsub.f32 %v944, %v957
        %v978 = vsub.f32 %v945, %v960
        %v979 = vsub.f32 %v946, %v963
        %v980 = vsub.f32 %v947, %v966
        %v981 = vsub.f32 %v948, %v969
        %v982 = vsub.f32 %v949, %v972
        %v983 = vsub.f32 %v950, %v975
        %v984 = vmul.f32 %v976, 1.442695
        %v985 = vpow.pop %v984
        %v986 = vmul.f32 %v977, 1.442695
        %v987 = vpow.pop %v986
        %v988 = vmul.f32 %v978, 1.442695
        %v989 = vpow.pop %v988
        %v990 = vmul.f32 %v979, 1.442695
        %v991 = vpow.pop %v990
        %v992 = vmul.f32 %v980, 1.442695
        %v993 = vpow.pop %v992
        %v994 = vmul.f32 %v981, 1.442695
        %v995 = vpow.pop %v994
        %v996 = vmul.f32 %v982, 1.442695
        %v997 = vpow.pop %v996
        %v998 = vmul.f32 %v983, 1.442695
        %v999 = vpow.pop %v998
        %v1000 = vsel %vm951, %v985, 0.0
        %1001 = vadd.xlane.f32.xlu0 %v1000
        %v1002 = vpop.xlane.xlu0 %1001
        %v1003 = vsel %vm951, %v987, 0.0
        %1004 = vadd.xlane.f32.xlu0 %v1003
        %v1005 = vpop.xlane.xlu0 %1004
        %v1006 = vsel %vm951, %v989, 0.0
        %1007 = vadd.xlane.f32.xlu0 %v1006
        %v1008 = vpop.xlane.xlu0 %1007
        %v1009 = vsel %vm951, %v991, 0.0
        %1010 = vadd.xlane.f32.xlu0 %v1009
        %v1011 = vpop.xlane.xlu0 %1010
        %v1012 = vsel %vm951, %v993, 0.0
        %1013 = vadd.xlane.f32.xlu0 %v1012
        %v1014 = vpop.xlane.xlu0 %1013
        %v1015 = vsel %vm951, %v995, 0.0
        %1016 = vadd.xlane.f32.xlu0 %v1015
        %v1017 = vpop.xlane.xlu0 %1016
        %v1018 = vsel %vm951, %v997, 0.0
        %1019 = vadd.xlane.f32.xlu0 %v1018
        %v1020 = vpop.xlane.xlu0 %1019
        %v1021 = vsel %vm951, %v999, 0.0
        %1022 = vadd.xlane.f32.xlu0 %v1021
        %v1023 = vpop.xlane.xlu0 %1022
        %v1024 = vrcp.pop %v1002
        %v1025 = vmul.f32 %v985, %v1024
        %v1026 = vrcp.pop %v1005
        %v1027 = vmul.f32 %v987, %v1026
        %v1028 = vrcp.pop %v1008
        %v1029 = vmul.f32 %v989, %v1028
        %v1030 = vrcp.pop %v1011
        %v1031 = vmul.f32 %v991, %v1030
        %v1032 = vrcp.pop %v1014
        %v1033 = vmul.f32 %v993, %v1032
        %v1034 = vrcp.pop %v1017
        %v1035 = vmul.f32 %v995, %v1034
        %v1036 = vrcp.pop %v1020
        %v1037 = vmul.f32 %v997, %v1036
        %v1038 = vrcp.pop %v1023
        %v1039 = vmul.f32 %v999, %v1038
        %v1040 = vld [vmem:[%s2] sm:$0xff]
        %v1041 = vld [vmem:[%s2 + $0x8] sm:$0xff]
        %v1043 = vsel %vm951, %v1025, 0
        %v1046 = vsel %vm951, %v1027, 0
        %v1049 = vsel %vm951, %v1029, 0
        %v1052 = vsel %vm951, %v1031, 0
        %v1055 = vsel %vm951, %v1033, 0
        %v1058 = vsel %vm951, %v1035, 0
        %v1061 = vsel %vm951, %v1037, 0
        %v1064 = vsel %vm951, %v1039, 0
        %1066 = vmatprep.subr.mxu0 %v1041
        %1067 = vmatpush1.msra.mxu0 %v1040
        %1068 = vmatprep.subr.mxu0 0.0
        %1069 = vmatpush1.msra.mxu0 0.0
        %1070 = vmatprep.subr.mxu0 0.0
        %1071 = vmatpush1.msra.mxu0 0.0
        %1072 = vmatprep.subr.mxu0 0.0
        %1073 = vmatpush1.msra.mxu0 0.0
        %1074 = vmatprep.subr.mxu0 0.0
        %1075 = vmatpush1.msra.mxu0 0.0
        %1076 = vmatprep.subr.mxu0 0.0
        %1077 = vmatpush1.msra.mxu0 0.0
        %1078 = vmatprep.subr.mxu0 0.0
        %1079 = vmatpush1.msra.mxu0 0.0
        %1080 = vmatprep.subr.mxu0 0.0
        %1081 = vmatpush1.msra.mxu0 0.0
        %1082 = vmatprep.subr.mxu0 0.0
        %1083 = vmatpush1.msra.mxu0 0.0
        %1084 = vmatprep.subr.mxu0 0.0
        %1085 = vmatpush1.msra.mxu0 0.0
        %1086 = vmatprep.subr.mxu0 0.0
        %1087 = vmatpush1.msra.mxu0 0.0
        %1088 = vmatprep.subr.mxu0 0.0
        %1089 = vmatpush1.msra.mxu0 0.0
        %1090 = vmatprep.subr.mxu0 0.0
        %1091 = vmatpush1.msra.mxu0 0.0
        %1092 = vmatprep.subr.mxu0 0.0
        %1093 = vmatpush1.msra.mxu0 0.0
        %1094 = vmatprep.subr.mxu0 0.0
        %1095 = vmatpush1.msra.mxu0 0.0
        %1096 = vmatprep.subr.mxu0 0.0
        %1097 = vmatpush1.msra.mxu0 0.0
        %1098 = vmatprep.subr.mxu0 0.0
        %1099 = vmatpush1.msra.mxu0 0.0
        %1100 = vmatprep.subr.mxu0 0.0
        %1101 = vmatpush1.msra.mxu0 0.0
        %1102 = vmatprep.subr.mxu0 0.0
        %1103 = vmatpush1.msra.mxu0 0.0
        %1104 = vmatprep.subr.mxu0 0.0
        %1105 = vmatpush1.msra.mxu0 0.0
        %1106 = vmatprep.subr.mxu0 0.0
        %1107 = vmatpush1.msra.mxu0 0.0
        %1108 = vmatprep.subr.mxu0 0.0
        %1109 = vmatpush1.msra.mxu0 0.0
        %1110 = vmatprep.subr.mxu0 0.0
        %1111 = vmatpush1.msra.mxu0 0.0
        %1112 = vmatprep.subr.mxu0 0.0
        %1113 = vmatpush1.msra.mxu0 0.0
        %1114 = vmatprep.subr.mxu0 0.0
        %1115 = vmatpush1.msra.mxu0 0.0
        %1116 = vmatprep.subr.mxu0 0.0
        %1117 = vmatpush1.msra.mxu0 0.0
        %1118 = vmatprep.subr.mxu0 0.0
        %1119 = vmatpush1.msra.mxu0 0.0
        %1120 = vmatprep.subr.mxu0 0.0
        %1121 = vmatpush1.msra.mxu0 0.0
        %1122 = vmatprep.subr.mxu0 0.0
        %1123 = vmatpush1.msra.mxu0 0.0
        %1124 = vmatprep.subr.mxu0 0.0
        %1125 = vmatpush1.msra.mxu0 0.0
        %1126 = vmatprep.subr.mxu0 0.0
        %1127 = vmatpush1.msra.mxu0 0.0
        %1128 = vmatprep.subr.mxu0 0.0
        %1129 = vmatpush1.msra.mxu0 0.0
        %1130 = vmatprep.mubr.f32.mxu0 0.0
        %1131 = vmatmul.mubr.f32.gmra.mrb[0].mxu0 %v1043
        %v1132 = vpop.f32.mrb[0].mxu0
        %v1133 = vadd.f32 0.0, %v1132
        %v1134 = vpop.f32.mrb[0].mxu0
        %v1135 = vadd.f32 0.0, %v1134
        %1136 = vmatprep.mubr.f32.mxu0 0.0
        %1137 = vmatmul.mubr.f32.gmra.mrb[0].mxu0 %v1046
        %v1138 = vpop.f32.mrb[0].mxu0
        %v1139 = vadd.f32 0.0, %v1138
        %v1140 = vpop.f32.mrb[0].mxu0
        %v1141 = vadd.f32 0.0, %v1140
        %1142 = vmatprep.mubr.f32.mxu0 0.0
        %1143 = vmatmul.mubr.f32.gmra.mrb[0].mxu0 %v1049
        %v1144 = vpop.f32.mrb[0].mxu0
        %v1145 = vadd.f32 0.0, %v1144
        %v1146 = vpop.f32.mrb[0].mxu0
        %v1147 = vadd.f32 0.0, %v1146
        %1148 = vmatprep.mubr.f32.mxu0 0.0
        %1149 = vmatmul.mubr.f32.gmra.mrb[0].mxu0 %v1052
        %v1150 = vpop.f32.mrb[0].mxu0
        %v1151 = vadd.f32 0.0, %v1150
        %v1152 = vpop.f32.mrb[0].mxu0
        %v1153 = vadd.f32 0.0, %v1152
        %1154 = vmatprep.mubr.f32.mxu0 0.0
        %1155 = vmatmul.mubr.f32.gmra.mrb[0].mxu0 %v1055
        %v1156 = vpop.f32.mrb[0].mxu0
        %v1157 = vadd.f32 0.0, %v1156
        %v1158 = vpop.f32.mrb[0].mxu0
        %v1159 = vadd.f32 0.0, %v1158
        %1160 = vmatprep.mubr.f32.mxu0 0.0
        %1161 = vmatmul.mubr.f32.gmra.mrb[0].mxu0 %v1058
        %v1162 = vpop.f32.mrb[0].mxu0
        %v1163 = vadd.f32 0.0, %v1162
        %v1164 = vpop.f32.mrb[0].mxu0
        %v1165 = vadd.f32 0.0, %v1164
        %1166 = vmatprep.mubr.f32.mxu0 0.0
        %1167 = vmatmul.mubr.f32.gmra.mrb[0].mxu0 %v1061
        %v1168 = vpop.f32.mrb[0].mxu0
        %v1169 = vadd.f32 0.0, %v1168
        %v1170 = vpop.f32.mrb[0].mxu0
        %v1171 = vadd.f32 0.0, %v1170
        %1172 = vmatprep.mubr.f32.mxu0 0.0
        %1173 = vmatmul.mubr.f32.gmra.mrb[0].mxu0 %v1064
        %v1174 = vpop.f32.mrb[0].mxu0
        %v1175 = vadd.f32 0.0, %v1174
        %v1176 = vpop.f32.mrb[0].mxu0
        %v1177 = vadd.f32 0.0, %v1176
        %1178 = vdwg.mxu0
        %v1179 = vld [vmem:[#allocation2] sm:$0xff]
        %v1180 = vld [vmem:[#allocation2 + $0x8] sm:$0xff]
        %v1181 = vld [vmem:[#allocation2 + $0x10] sm:$0xff]
        %v1182 = vld [vmem:[#allocation2 + $0x18] sm:$0xff]
        %v1183 = vld [vmem:[#allocation2 + $0x20] sm:$0xff]
        %v1184 = vld [vmem:[#allocation2 + $0x28] sm:$0xff]
        %v1185 = vld [vmem:[#allocation2 + $0x30] sm:$0xff]
        %v1186 = vld [vmem:[#allocation2 + $0x38] sm:$0xff]
        %v1187 = vld [vmem:[#allocation2 + $0x40] sm:$0xff]
        %v1188 = vld [vmem:[#allocation2 + $0x48] sm:$0xff]
        %v1189 = vld [vmem:[#allocation2 + $0x50] sm:$0xff]
        %v1190 = vld [vmem:[#allocation2 + $0x58] sm:$0xff]
        %v1191 = vld [vmem:[#allocation2 + $0x60] sm:$0xff]
        %v1192 = vld [vmem:[#allocation2 + $0x68] sm:$0xff]
        %v1193 = vld [vmem:[#allocation2 + $0x70] sm:$0xff]
        %v1194 = vld [vmem:[#allocation2 + $0x78] sm:$0xff]
        %v1195 = vld [vmem:[#allocation2 + $0x80] sm:$0xff]
        %v1196 = vld [vmem:[#allocation2 + $0x88] sm:$0xff]
        %v1197 = vld [vmem:[#allocation2 + $0x90] sm:$0xff]
        %v1198 = vld [vmem:[#allocation2 + $0x98] sm:$0xff]
        %v1199 = vld [vmem:[#allocation2 + $0xa0] sm:$0xff]
        %v1200 = vld [vmem:[#allocation2 + $0xa8] sm:$0xff]
        %v1201 = vld [vmem:[#allocation2 + $0xb0] sm:$0xff]
        %v1202 = vld [vmem:[#allocation2 + $0xb8] sm:$0xff]
        %v1203 = vld [vmem:[#allocation2 + $0xc0] sm:$0xff]
        %v1204 = vld [vmem:[#allocation2 + $0xc8] sm:$0xff]
        %v1205 = vld [vmem:[#allocation2 + $0xd0] sm:$0xff]
        %v1206 = vld [vmem:[#allocation2 + $0xd8] sm:$0xff]
        %v1207 = vld [vmem:[#allocation2 + $0xe0] sm:$0xff]
        %v1208 = vld [vmem:[#allocation2 + $0xe8] sm:$0xff]
        %v1209 = vld [vmem:[#allocation2 + $0xf0] sm:$0xff]
        %v1210 = vld [vmem:[#allocation2 + $0xf8] sm:$0xff]
        %v1211 = vmul.f32 %v1133, %v1179
        %v1212 = vmul.f32 %v1135, %v1180
        %v1213 = vmul.f32 %v1139, %v1181
        %v1214 = vmul.f32 %v1141, %v1182
        %v1215 = vmul.f32 %v1145, %v1183
        %v1216 = vmul.f32 %v1147, %v1184
        %v1217 = vmul.f32 %v1151, %v1185
        %v1218 = vmul.f32 %v1153, %v1186
        %v1219 = vmul.f32 %v1157, %v1187
        %v1220 = vmul.f32 %v1159, %v1188
        %v1221 = vmul.f32 %v1163, %v1189
        %v1222 = vmul.f32 %v1165, %v1190
        %v1223 = vmul.f32 %v1169, %v1191
        %v1224 = vmul.f32 %v1171, %v1192
        %v1225 = vmul.f32 %v1175, %v1193
        %v1226 = vmul.f32 %v1177, %v1194
        %v1227 = vmul.f32 %v1133, %v1195
        %v1228 = vmul.f32 %v1135, %v1196
        %v1229 = vmul.f32 %v1139, %v1197
        %v1230 = vmul.f32 %v1141, %v1198
        %v1231 = vmul.f32 %v1145, %v1199
        %v1232 = vmul.f32 %v1147, %v1200
        %v1233 = vmul.f32 %v1151, %v1201
        %v1234 = vmul.f32 %v1153, %v1202
        %v1235 = vmul.f32 %v1157, %v1203
        %v1236 = vmul.f32 %v1159, %v1204
        %v1237 = vmul.f32 %v1163, %v1205
        %v1238 = vmul.f32 %v1165, %v1206
        %v1239 = vmul.f32 %v1169, %v1207
        %v1240 = vmul.f32 %v1171, %v1208
        %v1241 = vmul.f32 %v1175, %v1209
        %v1242 = vmul.f32 %v1177, %v1210
        %v1243 = vadd.f32 %v1211, %v1213
        %v1244 = vadd.f32 %v1243, %v1215
        %v1245 = vadd.f32 %v1244, %v1217
        %v1246 = vadd.f32 %v1245, %v1219
        %v1247 = vadd.f32 %v1246, %v1221
        %v1248 = vadd.f32 %v1247, %v1223
        %v1249 = vadd.f32 %v1248, %v1225
        %v1250 = vrot.slane %v1249, 4
        %v1251 = vadd.f32 %v1249, %v1250
        %v1252 = vrot.slane %v1251, 2
        %v1253 = vadd.f32 %v1251, %v1252
        %v1254 = vrot.slane %v1253, 1
        %v1255 = vadd.f32 %v1253, %v1254
        %v1256 = vadd.f32 %v1212, %v1214
        %v1257 = vadd.f32 %v1256, %v1216
        %v1258 = vadd.f32 %v1257, %v1218
        %v1259 = vadd.f32 %v1258, %v1220
        %v1260 = vadd.f32 %v1259, %v1222
        %v1261 = vadd.f32 %v1260, %v1224
        %v1262 = vadd.f32 %v1261, %v1226
        %v1263 = vrot.slane %v1262, 4
        %v1264 = vadd.f32 %v1262, %v1263
        %v1265 = vrot.slane %v1264, 2
        %v1266 = vadd.f32 %v1264, %v1265
        %v1267 = vrot.slane %v1266, 1
        %v1268 = vadd.f32 %v1266, %v1267
        %v1269 = vadd.f32 %v1227, %v1229
        %v1270 = vadd.f32 %v1269, %v1231
        %v1271 = vadd.f32 %v1270, %v1233
        %v1272 = vadd.f32 %v1271, %v1235
        %v1273 = vadd.f32 %v1272, %v1237
        %v1274 = vadd.f32 %v1273, %v1239
        %v1275 = vadd.f32 %v1274, %v1241
        %v1276 = vrot.slane %v1275, 4
        %v1277 = vadd.f32 %v1275, %v1276
        %v1278 = vrot.slane %v1277, 2
        %v1279 = vadd.f32 %v1277, %v1278
        %v1280 = vrot.slane %v1279, 1
        %v1281 = vadd.f32 %v1279, %v1280
        %v1282 = vadd.f32 %v1228, %v1230
        %v1283 = vadd.f32 %v1282, %v1232
        %v1284 = vadd.f32 %v1283, %v1234
        %v1285 = vadd.f32 %v1284, %v1236
        %v1286 = vadd.f32 %v1285, %v1238
        %v1287 = vadd.f32 %v1286, %v1240
        %v1288 = vadd.f32 %v1287, %v1242
        %v1289 = vrot.slane %v1288, 4
        %v1290 = vadd.f32 %v1288, %v1289
        %v1291 = vrot.slane %v1290, 2
        %v1292 = vadd.f32 %v1290, %v1291
        %v1293 = vrot.slane %v1292, 1
        %v1294 = vadd.f32 %v1292, %v1293
        %v1295 = vmul.f32 %v1255, %v1255
        %v1296 = vmul.f32 %v1268, %v1268
        %v1297 = vmul.f32 %v1281, %v1281
        %v1298 = vmul.f32 %v1294, %v1294
        %v1299 = vld [vmem:[%s3] sm:$0xff]
        %v1300 = vld [vmem:[%s3 + $0x8] sm:$0xff]
        %v1301 = vld [vmem:[%s3 + $0x10] sm:$0xff]
        %v1302 = vld [vmem:[%s3 + $0x18] sm:$0xff]
        %v1303 = vld [vmem:[%s3 + $0x20] sm:$0xff]
        %v1304 = vld [vmem:[%s3 + $0x28] sm:$0xff]
        %v1305 = vld [vmem:[%s3 + $0x30] sm:$0xff]
        %v1306 = vld [vmem:[%s3 + $0x38] sm:$0xff]
        %v1307 = vld [vmem:[%s3 + $0x40] sm:$0xff]
        %v1308 = vld [vmem:[%s3 + $0x48] sm:$0xff]
        %v1309 = vld [vmem:[%s3 + $0x50] sm:$0xff]
        %v1310 = vld [vmem:[%s3 + $0x58] sm:$0xff]
        %v1311 = vld [vmem:[%s3 + $0x60] sm:$0xff]
        %v1312 = vld [vmem:[%s3 + $0x68] sm:$0xff]
        %v1313 = vld [vmem:[%s3 + $0x70] sm:$0xff]
        %v1314 = vld [vmem:[%s3 + $0x78] sm:$0xff]
        %v1315 = vld [vmem:[%s3 + $0x80] sm:$0xff]
        %v1316 = vld [vmem:[%s3 + $0x88] sm:$0xff]
        %v1317 = vld [vmem:[%s3 + $0x90] sm:$0xff]
        %v1318 = vld [vmem:[%s3 + $0x98] sm:$0xff]
        %v1319 = vld [vmem:[%s3 + $0xa0] sm:$0xff]
        %v1320 = vld [vmem:[%s3 + $0xa8] sm:$0xff]
        %v1321 = vld [vmem:[%s3 + $0xb0] sm:$0xff]
        %v1322 = vld [vmem:[%s3 + $0xb8] sm:$0xff]
        %v1323 = vld [vmem:[%s3 + $0xc0] sm:$0xff]
        %v1324 = vld [vmem:[%s3 + $0xc8] sm:$0xff]
        %v1325 = vld [vmem:[%s3 + $0xd0] sm:$0xff]
        %v1326 = vld [vmem:[%s3 + $0xd8] sm:$0xff]
        %v1327 = vld [vmem:[%s3 + $0xe0] sm:$0xff]
        %v1328 = vld [vmem:[%s3 + $0xe8] sm:$0xff]
        %v1329 = vld [vmem:[%s3 + $0xf0] sm:$0xff]
        %v1330 = vld [vmem:[%s3 + $0xf8] sm:$0xff]
        %vm1335 = vcmask 1041409
        %v1336 = vsel %vm1335, %v1297, %v1295
        %v1337 = vsel %vm1335, %v1298, %v1296
        %1340 = vmatprep.subr.mxu0 0.0
        %1341 = vmatpush1.msra.mxu0 %v1299
        %1342 = vmatprep.subr.mxu0 0.0
        %1343 = vmatpush1.msra.mxu0 %v1300
        %1344 = vmatprep.subr.mxu0 0.0
        %1345 = vmatpush1.msra.mxu0 %v1301
        %1346 = vmatprep.subr.mxu0 0.0
        %1347 = vmatpush1.msra.mxu0 %v1302
        %1348 = vmatprep.subr.mxu0 0.0
        %1349 = vmatpush1.msra.mxu0 %v1303
        %1350 = vmatprep.subr.mxu0 0.0
        %1351 = vmatpush1.msra.mxu0 %v1304
        %1352 = vmatprep.subr.mxu0 0.0
        %1353 = vmatpush1.msra.mxu0 %v1305
        %1354 = vmatprep.subr.mxu0 0.0
        %1355 = vmatpush1.msra.mxu0 %v1306
        %1356 = vmatprep.subr.mxu0 0.0
        %1357 = vmatpush1.msra.mxu0 %v1307
        %1358 = vmatprep.subr.mxu0 0.0
        %1359 = vmatpush1.msra.mxu0 %v1308
        %1360 = vmatprep.subr.mxu0 0.0
        %1361 = vmatpush1.msra.mxu0 %v1309
        %1362 = vmatprep.subr.mxu0 0.0
        %1363 = vmatpush1.msra.mxu0 %v1310
        %1364 = vmatprep.subr.mxu0 0.0
        %1365 = vmatpush1.msra.mxu0 %v1311
        %1366 = vmatprep.subr.mxu0 0.0
        %1367 = vmatpush1.msra.mxu0 %v1312
        %1368 = vmatprep.subr.mxu0 0.0
        %1369 = vmatpush1.msra.mxu0 %v1313
        %1370 = vmatprep.subr.mxu0 0.0
        %1371 = vmatpush1.msra.mxu0 %v1314
        %1372 = vmatprep.subr.mxu0 0.0
        %1373 = vmatpush1.msra.mxu0 %v1315
        %1374 = vmatprep.subr.mxu0 0.0
        %1375 = vmatpush1.msra.mxu0 %v1316
        %1376 = vmatprep.subr.mxu0 0.0
        %1377 = vmatpush1.msra.mxu0 %v1317
        %1378 = vmatprep.subr.mxu0 0.0
        %1379 = vmatpush1.msra.mxu0 %v1318
        %1380 = vmatprep.subr.mxu0 0.0
        %1381 = vmatpush1.msra.mxu0 %v1319
        %1382 = vmatprep.subr.mxu0 0.0
        %1383 = vmatpush1.msra.mxu0 %v1320
        %1384 = vmatprep.subr.mxu0 0.0
        %1385 = vmatpush1.msra.mxu0 %v1321
        %1386 = vmatprep.subr.mxu0 0.0
        %1387 = vmatpush1.msra.mxu0 %v1322
        %1388 = vmatprep.subr.mxu0 0.0
        %1389 = vmatpush1.msra.mxu0 %v1323
        %1390 = vmatprep.subr.mxu0 0.0
        %1391 = vmatpush1.msra.mxu0 %v1324
        %1392 = vmatprep.subr.mxu0 0.0
        %1393 = vmatpush1.msra.mxu0 %v1325
        %1394 = vmatprep.subr.mxu0 0.0
        %1395 = vmatpush1.msra.mxu0 %v1326
        %1396 = vmatprep.subr.mxu0 0.0
        %1397 = vmatpush1.msra.mxu0 %v1327
        %1398 = vmatprep.subr.mxu0 0.0
        %1399 = vmatpush1.msra.mxu0 %v1328
        %1400 = vmatprep.subr.mxu0 0.0
        %1401 = vmatpush1.msra.mxu0 %v1329
        %1402 = vmatprep.subr.mxu0 0.0
        %1403 = vmatpush1.msra.mxu0 %v1330
        %1404 = vmatprep.mubr.f32.mxu0 %v1337
        %1405 = vmatmul.mubr.f32.gmra.mrb[0].mxu0 %v1336
        %v1406 = vpop.f32.mrb[0].mxu0
        %v1407 = vadd.f32 1.0, %v1406
        %v1408 = vpop.f32.mrb[0].mxu0
        %1409 = vdwg.mxu0
        %v1410 = vrcp.pop %v1407
        %v1411 = vmul.f32 %v1407, %v1410
        %v1412 = vsub.f32 2.0, %v1411
        %v1413 = vmul.f32 %v1410, %v1412
        %v1415 = vsel %vm951, %v1413, 0
        %1417 = vmatprep.subr.mxu0 %v1041
        %1418 = vmatpush1.msra.mxu0 %v1040
        %1419 = vmatprep.subr.mxu0 0.0
        %1420 = vmatpush1.msra.mxu0 0.0
        %1421 = vmatprep.subr.mxu0 0.0
        %1422 = vmatpush1.msra.mxu0 0.0
        %1423 = vmatprep.subr.mxu0 0.0
        %1424 = vmatpush1.msra.mxu0 0.0
        %1425 = vmatprep.subr.mxu0 0.0
        %1426 = vmatpush1.msra.mxu0 0.0
        %1427 = vmatprep.subr.mxu0 0.0
        %1428 = vmatpush1.msra.mxu0 0.0
        %1429 = vmatprep.subr.mxu0 0.0
        %1430 = vmatpush1.msra.mxu0 0.0
        %1431 = vmatprep.subr.mxu0 0.0
        %1432 = vmatpush1.msra.mxu0 0.0
        %1433 = vmatprep.subr.mxu0 0.0
        %1434 = vmatpush1.msra.mxu0 0.0
        %1435 = vmatprep.subr.mxu0 0.0
        %1436 = vmatpush1.msra.mxu0 0.0
        %1437 = vmatprep.subr.mxu0 0.0
        %1438 = vmatpush1.msra.mxu0 0.0
        %1439 = vmatprep.subr.mxu0 0.0
        %1440 = vmatpush1.msra.mxu0 0.0
        %1441 = vmatprep.subr.mxu0 0.0
        %1442 = vmatpush1.msra.mxu0 0.0
        %1443 = vmatprep.subr.mxu0 0.0
        %1444 = vmatpush1.msra.mxu0 0.0
        %1445 = vmatprep.subr.mxu0 0.0
        %1446 = vmatpush1.msra.mxu0 0.0
        %1447 = vmatprep.subr.mxu0 0.0
        %1448 = vmatpush1.msra.mxu0 0.0
        %1449 = vmatprep.subr.mxu0 0.0
        %1450 = vmatpush1.msra.mxu0 0.0
        %1451 = vmatprep.subr.mxu0 0.0
        %1452 = vmatpush1.msra.mxu0 0.0
        %1453 = vmatprep.subr.mxu0 0.0
        %1454 = vmatpush1.msra.mxu0 0.0
        %1455 = vmatprep.subr.mxu0 0.0
        %1456 = vmatpush1.msra.mxu0 0.0
        %1457 = vmatprep.subr.mxu0 0.0
        %1458 = vmatpush1.msra.mxu0 0.0
        %1459 = vmatprep.subr.mxu0 0.0
        %1460 = vmatpush1.msra.mxu0 0.0
        %1461 = vmatprep.subr.mxu0 0.0
        %1462 = vmatpush1.msra.mxu0 0.0
        %1463 = vmatprep.subr.mxu0 0.0
        %1464 = vmatpush1.msra.mxu0 0.0
        %1465 = vmatprep.subr.mxu0 0.0
        %1466 = vmatpush1.msra.mxu0 0.0
        %1467 = vmatprep.subr.mxu0 0.0
        %1468 = vmatpush1.msra.mxu0 0.0
        %1469 = vmatprep.subr.mxu0 0.0
        %1470 = vmatpush1.msra.mxu0 0.0
        %1471 = vmatprep.subr.mxu0 0.0
        %1472 = vmatpush1.msra.mxu0 0.0
        %1473 = vmatprep.subr.mxu0 0.0
        %1474 = vmatpush1.msra.mxu0 0.0
        %1475 = vmatprep.subr.mxu0 0.0
        %1476 = vmatpush1.msra.mxu0 0.0
        %1477 = vmatprep.subr.mxu0 0.0
        %1478 = vmatpush1.msra.mxu0 0.0
        %1479 = vmatprep.subr.mxu0 0.0
        %1480 = vmatpush1.msra.mxu0 0.0
        %1481 = vmatprep.mubr.f32.mxu0 0.0
        %1482 = vmatmul.mubr.f32.gmra.mrb[0].mxu0 %v1415
        %v1483 = vpop.f32.mrb[0].mxu0
        %v1484 = vadd.f32 0.0, %v1483
        %v1485 = vpop.f32.mrb[0].mxu0
        %v1486 = vadd.f32 0.0, %v1485
        %1487 = vdwg.mxu0
        %v1490 = vrot.slane %v1484, 1
        %v1491 = vrot.slane %v1486, 1
        %v1496 = vmul.f32 %v1255, %v1484
        %v1497 = vmul.f32 %v1268, %v1486
        %v1498 = vmul.f32 %v1281, %v1490
        %v1499 = vmul.f32 %v1294, %v1491
        %v1504 = vcombine.low %v1496, %v1497
        %v1506 = vunpack.c.l.s4 1983009808
        %v1507 = vunpack.c.0.s8 %v1506
        %v1508 = vlaneseq
        %v1509 = vshrl.u32 %v1508, 7
        %v1510 = vsub.s32 %v1507, %v1509
        %v1511 = vrot.slane %v1504, %v1510
        %v1512 = vcombine.low %v1498, %v1499
        %v1514 = vunpack.c.l.s4 1983009808
        %v1515 = vunpack.c.0.s8 %v1514
        %v1516 = vlaneseq
        %v1517 = vshrl.u32 %v1516, 7
        %v1518 = vsub.s32 %v1515, %v1517
        %v1519 = vrot.slane %v1512, %v1518
        %vm1520 = vcmask 1044484
        %v1521 = vsel %vm1520, %v1511, %v1511
        %vm1522 = vcmask 1046534
        %v1523 = vsel %vm1522, %v1511, %v1521
        %v1524 = vrot.slane %v1519, 7
        %v1525 = vsel %vm1335, %v1524, %v1523
        %vm1526 = vcmask 1043459
        %v1527 = vsel %vm1526, %v1524, %v1525
        %vm1528 = vcmask 1045509
        %v1529 = vsel %vm1528, %v1524, %v1527
        %vm1530 = vcmask 1047559
        %v1531 = vsel %vm1530, %v1524, %v1529
        %1533 = vst [vmem:[#allocation5] sm:$0xf] %v1531
        %p1534 = scmp.lt.s32.totalorder %s20, 2
        // Predicated region
        $region45: #{tpu_custom_call.1} parent=35 // pred_check
          %p1535 = pneg %p1534
        $region46: #{tpu_custom_call.1} parent=35 // pred_check_branch
          %1537 = sbr.rel (%p1535) target = $region48
        $region47: #{tpu_custom_call.1} parent=35 // pred_region
          %v1538 = vld [vmem:[#allocation2] sm:$0xff]
          %v1539 = vld [vmem:[#allocation2 + $0x8] sm:$0xff]
          %v1540 = vld [vmem:[#allocation2 + $0x10] sm:$0xff]
          %v1541 = vld [vmem:[#allocation2 + $0x18] sm:$0xff]
          %v1542 = vld [vmem:[#allocation2 + $0x20] sm:$0xff]
          %v1543 = vld [vmem:[#allocation2 + $0x28] sm:$0xff]
          %v1544 = vld [vmem:[#allocation2 + $0x30] sm:$0xff]
          %v1545 = vld [vmem:[#allocation2 + $0x38] sm:$0xff]
          %v1546 = vld [vmem:[#allocation2 + $0x40] sm:$0xff]
          %v1547 = vld [vmem:[#allocation2 + $0x48] sm:$0xff]
          %v1548 = vld [vmem:[#allocation2 + $0x50] sm:$0xff]
          %v1549 = vld [vmem:[#allocation2 + $0x58] sm:$0xff]
          %v1550 = vld [vmem:[#allocation2 + $0x60] sm:$0xff]
          %v1551 = vld [vmem:[#allocation2 + $0x68] sm:$0xff]
          %v1552 = vld [vmem:[#allocation2 + $0x70] sm:$0xff]
          %v1553 = vld [vmem:[#allocation2 + $0x78] sm:$0xff]
          %v1554 = vld [vmem:[#allocation2 + $0x80] sm:$0xff]
          %v1555 = vld [vmem:[#allocation2 + $0x88] sm:$0xff]
          %v1556 = vld [vmem:[#allocation2 + $0x90] sm:$0xff]
          %v1557 = vld [vmem:[#allocation2 + $0x98] sm:$0xff]
          %v1558 = vld [vmem:[#allocation2 + $0xa0] sm:$0xff]
          %v1559 = vld [vmem:[#allocation2 + $0xa8] sm:$0xff]
          %v1560 = vld [vmem:[#allocation2 + $0xb0] sm:$0xff]
          %v1561 = vld [vmem:[#allocation2 + $0xb8] sm:$0xff]
          %v1562 = vld [vmem:[#allocation2 + $0xc0] sm:$0xff]
          %v1563 = vld [vmem:[#allocation2 + $0xc8] sm:$0xff]
          %v1564 = vld [vmem:[#allocation2 + $0xd0] sm:$0xff]
          %v1565 = vld [vmem:[#allocation2 + $0xd8] sm:$0xff]
          %v1566 = vld [vmem:[#allocation2 + $0xe0] sm:$0xff]
          %v1567 = vld [vmem:[#allocation2 + $0xe8] sm:$0xff]
          %v1568 = vld [vmem:[#allocation2 + $0xf0] sm:$0xff]
          %v1569 = vld [vmem:[#allocation2 + $0xf8] sm:$0xff]
          %v1570 = vlaneseq
          %v1571 = vshrl.u32 %v1570, 7
          %v1572 = vsub.s32 0, %v1571
          %v1573 = vrot.slane %v1496, %v1572
          %v1574 = vlaneseq
          %v1575 = vshrl.u32 %v1574, 7
          %v1576 = vsub.s32 0, %v1575
          %v1577 = vrot.slane %v1497, %v1576
          %v1578 = vlaneseq
          %v1579 = vshrl.u32 %v1578, 7
          %v1580 = vsub.s32 0, %v1579
          %v1581 = vrot.slane %v1498, %v1580
          %v1582 = vlaneseq
          %v1583 = vshrl.u32 %v1582, 7
          %v1584 = vsub.s32 0, %v1583
          %v1585 = vrot.slane %v1499, %v1584
          %v1586 = vmul.f32 %v1538, %v1573
          %v1587 = vmul.f32 %v1539, %v1577
          %v1588 = vmul.f32 %v1540, %v1573
          %v1589 = vmul.f32 %v1541, %v1577
          %v1590 = vmul.f32 %v1542, %v1573
          %v1591 = vmul.f32 %v1543, %v1577
          %v1592 = vmul.f32 %v1544, %v1573
          %v1593 = vmul.f32 %v1545, %v1577
          %v1594 = vmul.f32 %v1546, %v1573
          %v1595 = vmul.f32 %v1547, %v1577
          %v1596 = vmul.f32 %v1548, %v1573
          %v1597 = vmul.f32 %v1549, %v1577
          %v1598 = vmul.f32 %v1550, %v1573
          %v1599 = vmul.f32 %v1551, %v1577
          %v1600 = vmul.f32 %v1552, %v1573
          %v1601 = vmul.f32 %v1553, %v1577
          %v1602 = vmul.f32 %v1554, %v1581
          %v1603 = vmul.f32 %v1555, %v1585
          %v1604 = vmul.f32 %v1556, %v1581
          %v1605 = vmul.f32 %v1557, %v1585
          %v1606 = vmul.f32 %v1558, %v1581
          %v1607 = vmul.f32 %v1559, %v1585
          %v1608 = vmul.f32 %v1560, %v1581
          %v1609 = vmul.f32 %v1561, %v1585
          %v1610 = vmul.f32 %v1562, %v1581
          %v1611 = vmul.f32 %v1563, %v1585
          %v1612 = vmul.f32 %v1564, %v1581
          %v1613 = vmul.f32 %v1565, %v1585
          %v1614 = vmul.f32 %v1566, %v1581
          %v1615 = vmul.f32 %v1567, %v1585
          %v1616 = vmul.f32 %v1568, %v1581
          %v1617 = vmul.f32 %v1569, %v1585
          %v1618 = vadd.f32 %v1586, %v1602
          %v1619 = vadd.f32 %v1587, %v1603
          %v1620 = vadd.f32 %v1588, %v1604
          %v1621 = vadd.f32 %v1589, %v1605
          %v1622 = vadd.f32 %v1590, %v1606
          %v1623 = vadd.f32 %v1591, %v1607
          %v1624 = vadd.f32 %v1592, %v1608
          %v1625 = vadd.f32 %v1593, %v1609
          %v1626 = vadd.f32 %v1594, %v1610
          %v1627 = vadd.f32 %v1595, %v1611
          %v1628 = vadd.f32 %v1596, %v1612
          %v1629 = vadd.f32 %v1597, %v1613
          %v1630 = vadd.f32 %v1598, %v1614
          %v1631 = vadd.f32 %v1599, %v1615
          %v1632 = vadd.f32 %v1600, %v1616
          %v1633 = vadd.f32 %v1601, %v1617
          %v1634 = vld [vmem:[#allocation4] sm:$0xff]
          %v1635 = vld [vmem:[#allocation4 + $0x8] sm:$0xff]
          %v1636 = vld [vmem:[#allocation4 + $0x10] sm:$0xff]
          %v1637 = vld [vmem:[#allocation4 + $0x18] sm:$0xff]
          %v1638 = vld [vmem:[#allocation4 + $0x20] sm:$0xff]
          %v1639 = vld [vmem:[#allocation4 + $0x28] sm:$0xff]
          %v1640 = vld [vmem:[#allocation4 + $0x30] sm:$0xff]
          %v1641 = vld [vmem:[#allocation4 + $0x38] sm:$0xff]
          %v1642 = vld [vmem:[%s3] sm:$0xff]
          %v1643 = vld [vmem:[%s3 + $0x8] sm:$0xff]
          %v1644 = vld [vmem:[%s3 + $0x10] sm:$0xff]
          %v1645 = vld [vmem:[%s3 + $0x18] sm:$0xff]
          %v1646 = vld [vmem:[%s3 + $0x20] sm:$0xff]
          %v1647 = vld [vmem:[%s3 + $0x28] sm:$0xff]
          %v1648 = vld [vmem:[%s3 + $0x30] sm:$0xff]
          %v1649 = vld [vmem:[%s3 + $0x38] sm:$0xff]
          %v1650 = vld [vmem:[%s3 + $0x40] sm:$0xff]
          %v1651 = vld [vmem:[%s3 + $0x48] sm:$0xff]
          %v1652 = vld [vmem:[%s3 + $0x50] sm:$0xff]
          %v1653 = vld [vmem:[%s3 + $0x58] sm:$0xff]
          %v1654 = vld [vmem:[%s3 + $0x60] sm:$0xff]
          %v1655 = vld [vmem:[%s3 + $0x68] sm:$0xff]
          %v1656 = vld [vmem:[%s3 + $0x70] sm:$0xff]
          %v1657 = vld [vmem:[%s3 + $0x78] sm:$0xff]
          %v1658 = vld [vmem:[%s3 + $0x80] sm:$0xff]
          %v1659 = vld [vmem:[%s3 + $0x88] sm:$0xff]
          %v1660 = vld [vmem:[%s3 + $0x90] sm:$0xff]
          %v1661 = vld [vmem:[%s3 + $0x98] sm:$0xff]
          %v1662 = vld [vmem:[%s3 + $0xa0] sm:$0xff]
          %v1663 = vld [vmem:[%s3 + $0xa8] sm:$0xff]
          %v1664 = vld [vmem:[%s3 + $0xb0] sm:$0xff]
          %v1665 = vld [vmem:[%s3 + $0xb8] sm:$0xff]
          %v1666 = vld [vmem:[%s3 + $0xc0] sm:$0xff]
          %v1667 = vld [vmem:[%s3 + $0xc8] sm:$0xff]
          %v1668 = vld [vmem:[%s3 + $0xd0] sm:$0xff]
          %v1669 = vld [vmem:[%s3 + $0xd8] sm:$0xff]
          %v1670 = vld [vmem:[%s3 + $0xe0] sm:$0xff]
          %v1671 = vld [vmem:[%s3 + $0xe8] sm:$0xff]
          %v1672 = vld [vmem:[%s3 + $0xf0] sm:$0xff]
          %v1673 = vld [vmem:[%s3 + $0xf8] sm:$0xff]
          %1674 = vmatprep.subr.mxu0 0.0
          %1675 = vmatpush1.msra.mxu0 %v1642
          %1676 = vmatprep.subr.mxu0 0.0
          %1677 = vmatpush1.msra.mxu0 %v1643
          %1678 = vmatprep.subr.mxu0 0.0
          %1679 = vmatpush1.msra.mxu0 %v1644
          %1680 = vmatprep.subr.mxu0 0.0
          %1681 = vmatpush1.msra.mxu0 %v1645
          %1682 = vmatprep.subr.mxu0 0.0
          %1683 = vmatpush1.msra.mxu0 %v1646
          %1684 = vmatprep.subr.mxu0 0.0
          %1685 = vmatpush1.msra.mxu0 %v1647
          %1686 = vmatprep.subr.mxu0 0.0
          %1687 = vmatpush1.msra.mxu0 %v1648
          %1688 = vmatprep.subr.mxu0 0.0
          %1689 = vmatpush1.msra.mxu0 %v1649
          %1690 = vmatprep.subr.mxu0 0.0
          %1691 = vmatpush1.msra.mxu0 %v1650
          %1692 = vmatprep.subr.mxu0 0.0
          %1693 = vmatpush1.msra.mxu0 %v1651
          %1694 = vmatprep.subr.mxu0 0.0
          %1695 = vmatpush1.msra.mxu0 %v1652
          %1696 = vmatprep.subr.mxu0 0.0
          %1697 = vmatpush1.msra.mxu0 %v1653
          %1698 = vmatprep.subr.mxu0 0.0
          %1699 = vmatpush1.msra.mxu0 %v1654
          %1700 = vmatprep.subr.mxu0 0.0
          %1701 = vmatpush1.msra.mxu0 %v1655
          %1702 = vmatprep.subr.mxu0 0.0
          %1703 = vmatpush1.msra.mxu0 %v1656
          %1704 = vmatprep.subr.mxu0 0.0
          %1705 = vmatpush1.msra.mxu0 %v1657
          %1706 = vmatprep.subr.mxu0 0.0
          %1707 = vmatpush1.msra.mxu0 %v1658
          %1708 = vmatprep.subr.mxu0 0.0
          %1709 = vmatpush1.msra.mxu0 %v1659
          %1710 = vmatprep.subr.mxu0 0.0
          %1711 = vmatpush1.msra.mxu0 %v1660
          %1712 = vmatprep.subr.mxu0 0.0
          %1713 = vmatpush1.msra.mxu0 %v1661
          %1714 = vmatprep.subr.mxu0 0.0
          %1715 = vmatpush1.msra.mxu0 %v1662
          %1716 = vmatprep.subr.mxu0 0.0
          %1717 = vmatpush1.msra.mxu0 %v1663
          %1718 = vmatprep.subr.mxu0 0.0
          %1719 = vmatpush1.msra.mxu0 %v1664
          %1720 = vmatprep.subr.mxu0 0.0
          %1721 = vmatpush1.msra.mxu0 %v1665
          %1722 = vmatprep.subr.mxu0 0.0
          %1723 = vmatpush1.msra.mxu0 %v1666
          %1724 = vmatprep.subr.mxu0 0.0
          %1725 = vmatpush1.msra.mxu0 %v1667
          %1726 = vmatprep.subr.mxu0 0.0
          %1727 = vmatpush1.msra.mxu0 %v1668
          %1728 = vmatprep.subr.mxu0 0.0
          %1729 = vmatpush1.msra.mxu0 %v1669
          %1730 = vmatprep.subr.mxu0 0.0
          %1731 = vmatpush1.msra.mxu0 %v1670
          %1732 = vmatprep.subr.mxu0 0.0
          %1733 = vmatpush1.msra.mxu0 %v1671
          %1734 = vmatprep.subr.mxu0 0.0
          %1735 = vmatpush1.msra.mxu0 %v1672
          %1736 = vmatprep.subr.mxu0 0.0
          %1737 = vmatpush1.msra.mxu0 %v1673
          %1738 = vmatprep.mubr.f32.mxu0 %v1619
          %1739 = vmatmul.mubr.f32.gmra.mrb[0].mxu0 %v1618
          %v1740 = vpop.f32.mrb[0].mxu0
          %v1741 = vadd.f32 0.0, %v1740
          %v1742 = vpop.f32.mrb[0].mxu0
          %1743 = vmatprep.mubr.f32.mxu0 %v1621
          %1744 = vmatmul.mubr.f32.gmra.mrb[0].mxu0 %v1620
          %v1745 = vpop.f32.mrb[0].mxu0
          %v1746 = vadd.f32 0.0, %v1745
          %v1747 = vpop.f32.mrb[0].mxu0
          %1748 = vmatprep.mubr.f32.mxu0 %v1623
          %1749 = vmatmul.mubr.f32.gmra.mrb[0].mxu0 %v1622
          %v1750 = vpop.f32.mrb[0].mxu0
          %v1751 = vadd.f32 0.0, %v1750
          %v1752 = vpop.f32.mrb[0].mxu0
          %1753 = vmatprep.mubr.f32.mxu0 %v1625
          %1754 = vmatmul.mubr.f32.gmra.mrb[0].mxu0 %v1624
          %v1755 = vpop.f32.mrb[0].mxu0
          %v1756 = vadd.f32 0.0, %v1755
          %v1757 = vpop.f32.mrb[0].mxu0
          %1758 = vmatprep.mubr.f32.mxu0 %v1627
          %1759 = vmatmul.mubr.f32.gmra.mrb[0].mxu0 %v1626
          %v1760 = vpop.f32.mrb[0].mxu0
          %v1761 = vadd.f32 0.0, %v1760
          %v1762 = vpop.f32.mrb[0].mxu0
          %1763 = vmatprep.mubr.f32.mxu0 %v1629
          %1764 = vmatmul.mubr.f32.gmra.mrb[0].mxu0 %v1628
          %v1765 = vpop.f32.mrb[0].mxu0
          %v1766 = vadd.f32 0.0, %v1765
          %v1767 = vpop.f32.mrb[0].mxu0
          %1768 = vmatprep.mubr.f32.mxu0 %v1631
          %1769 = vmatmul.mubr.f32.gmra.mrb[0].mxu0 %v1630
          %v1770 = vpop.f32.mrb[0].mxu0
          %v1771 = vadd.f32 0.0, %v1770
          %v1772 = vpop.f32.mrb[0].mxu0
          %1773 = vmatprep.mubr.f32.mxu0 %v1633
          %1774 = vmatmul.mubr.f32.gmra.mrb[0].mxu0 %v1632
          %v1775 = vpop.f32.mrb[0].mxu0
          %v1776 = vadd.f32 0.0, %v1775
          %v1777 = vpop.f32.mrb[0].mxu0
          %1778 = vdwg.mxu0
          %v1779 = vadd.f32 %v1634, %v1741
          %v1780 = vadd.f32 %v1635, %v1746
          %v1781 = vadd.f32 %v1636, %v1751
          %v1782 = vadd.f32 %v1637, %v1756
          %v1783 = vadd.f32 %v1638, %v1761
          %v1784 = vadd.f32 %v1639, %v1766
          %v1785 = vadd.f32 %v1640, %v1771
          %v1786 = vadd.f32 %v1641, %v1776
          %1787 = vst.msk [vmem:[#allocation4] sm:$0xff] %vm951, %v1779
          %1788 = vst.msk [vmem:[#allocation4 + $0x8] sm:$0xff] %vm951, %v1780
          %1789 = vst.msk [vmem:[#allocation4 + $0x10] sm:$0xff] %vm951, %v1781
          %1790 = vst.msk [vmem:[#allocation4 + $0x18] sm:$0xff] %vm951, %v1782
          %1791 = vst.msk [vmem:[#allocation4 + $0x20] sm:$0xff] %vm951, %v1783
          %1792 = vst.msk [vmem:[#allocation4 + $0x28] sm:$0xff] %vm951, %v1784
          %1793 = vst.msk [vmem:[#allocation4 + $0x30] sm:$0xff] %vm951, %v1785
          %1794 = vst.msk [vmem:[#allocation4 + $0x38] sm:$0xff] %vm951, %v1786
        $region48: #{tpu_custom_call.1} parent=35 // pred_fallthru
          _
        %p1795 = pnand %p1534, %p207
        %p1796 = pneg %p1795
        // Predicated region
        $region49: #{tpu_custom_call.1} parent=35 // pred_check
          _
        $region50: #{tpu_custom_call.1} parent=35 // pred_check_branch
          %1798 = sbr.rel (%p1795) target = $region52
        $region51: #{tpu_custom_call.1} parent=35 // pred_region
          %v1799 = vld [vmem:[#allocation3] sm:$0xff]
          %v1800 = vld [vmem:[#allocation3 + $0x8] sm:$0xff]
          %v1801 = vld [vmem:[#allocation3 + $0x10] sm:$0xff]
          %v1802 = vld [vmem:[#allocation3 + $0x18] sm:$0xff]
          %v1803 = vld [vmem:[#allocation3 + $0x20] sm:$0xff]
          %v1804 = vld [vmem:[#allocation3 + $0x28] sm:$0xff]
          %v1805 = vld [vmem:[#allocation3 + $0x30] sm:$0xff]
          %v1806 = vld [vmem:[#allocation3 + $0x38] sm:$0xff]
          %v1807 = vld [vmem:[#allocation4] sm:$0xff]
          %v1808 = vld [vmem:[#allocation4 + $0x8] sm:$0xff]
          %v1809 = vld [vmem:[#allocation4 + $0x10] sm:$0xff]
          %v1810 = vld [vmem:[#allocation4 + $0x18] sm:$0xff]
          %v1811 = vld [vmem:[#allocation4 + $0x20] sm:$0xff]
          %v1812 = vld [vmem:[#allocation4 + $0x28] sm:$0xff]
          %v1813 = vld [vmem:[#allocation4 + $0x30] sm:$0xff]
          %v1814 = vld [vmem:[#allocation4 + $0x38] sm:$0xff]
          %v1815 = vmul.f32 %v1807, 0.5
          %v1816 = vmul.f32 %v1808, 0.5
          %v1817 = vmul.f32 %v1809, 0.5
          %v1818 = vmul.f32 %v1810, 0.5
          %v1819 = vmul.f32 %v1811, 0.5
          %v1820 = vmul.f32 %v1812, 0.5
          %v1821 = vmul.f32 %v1813, 0.5
          %v1822 = vmul.f32 %v1814, 0.5
          %v1823 = vadd.f32 %v1799, %v1815
          %v1824 = vadd.f32 %v1800, %v1816
          %v1825 = vadd.f32 %v1801, %v1817
          %v1826 = vadd.f32 %v1802, %v1818
          %v1827 = vadd.f32 %v1803, %v1819
          %v1828 = vadd.f32 %v1804, %v1820
          %v1829 = vadd.f32 %v1805, %v1821
          %v1830 = vadd.f32 %v1806, %v1822
          %1831 = vst.msk [vmem:[#allocation3] sm:$0xff] %vm951, %v1823
          %1832 = vst.msk [vmem:[#allocation3 + $0x8] sm:$0xff] %vm951, %v1824
          %1833 = vst.msk [vmem:[#allocation3 + $0x10] sm:$0xff] %vm951, %v1825
          %1834 = vst.msk [vmem:[#allocation3 + $0x18] sm:$0xff] %vm951, %v1826
          %1835 = vst.msk [vmem:[#allocation3 + $0x20] sm:$0xff] %vm951, %v1827
          %1836 = vst.msk [vmem:[#allocation3 + $0x28] sm:$0xff] %vm951, %v1828
          %1837 = vst.msk [vmem:[#allocation3 + $0x30] sm:$0xff] %vm951, %v1829
          %1838 = vst.msk [vmem:[#allocation3 + $0x38] sm:$0xff] %vm951, %v1830
        $region52: #{tpu_custom_call.1} parent=35 // pred_fallthru
          _
        // Predicated region
        $region53: #{tpu_custom_call.1} parent=35 // pred_check
          %p1839 = pneg %p135
        $region54: #{tpu_custom_call.1} parent=35 // pred_check_branch
          %1841 = sbr.rel (%p1839) target = $region56
        $region55: #{tpu_custom_call.1} parent=35 // pred_region
          %s1843 = ssub.s32 64, 64
          %1844 = vsyncadd [#allocation6], %s1843
          %s1845 = smul.addr %s21, 2
          %s1846 = smul.addr %s1845, 32
          %s1847 = scalar_lea.hbm %s4, %s1846
          %s1849 = sshll.u32 [#allocation5], 4
          %s1850 = int_to_ptr.vmem [resolvable:$true] %s1849
          %1852 = dma.vmem_to_hbm [thread:$0]  %s1850, 64, %s1847, [#allocation6]
        $region56: #{tpu_custom_call.1} parent=35 // pred_fallthru
          _
        // Predicated region
        $region57: #{tpu_custom_call.1} parent=35 // pred_check
          %p1853 = pneg %p135
        $region58: #{tpu_custom_call.1} parent=35 // pred_check_branch
          %1855 = sbr.rel (%p1853) target = $region60
        $region59: #{tpu_custom_call.1} parent=35 // pred_region
          %1856 = dma.done [#allocation6], 64
        $region60: #{tpu_custom_call.1} parent=35 // pred_fallthru
          _
      $region36: #{tpu_custom_call.1} parent=5 // pred_fallthru
        _
      %p1857 = scmp.le.s32.totalorder 2, %s11
      // Predicated region
      $region61: #{tpu_custom_call.1} parent=5 // pred_check
        %p1858 = pneg %p1857
      $region62: #{tpu_custom_call.1} parent=5 // pred_check_branch
        %1860 = sbr.rel (%p1858) target = $region64
      $region63: #{tpu_custom_call.1} parent=5 // pred_region
        %s1861 = ssub.s32 %s11, 2
      $region64: #{tpu_custom_call.1} parent=5 // pred_fallthru
        _
    $region6: #{tpu_custom_call.1} parent=1 // loop_footer
      %s15 = sadd.s32 1, %s11
    $region7: #{tpu_custom_call.1} parent=1 // loop_footer_branch
      %10 = sbr.rel target = $region3
    $region8: #{tpu_custom_call.1} parent=1 // loop_exit
      _
    %1862 = vsyncpa [#allocation6], 1
    %s1863 = scalar_lea.sflag [#allocation6], 1
    %1864 = vsyncpa %s1863, 1

</llo_original>
